<compile_context>
chip_gen: v7x
topology: tpu7x:2x2x1
jax: 0.10.0
libtpu: 0.0.40
codegen_flags: <defaults>
</compile_context>

<pallas_src>
from functools import partial

import numpy as np
import jax
import jax.numpy as jnp
from jax.experimental import pallas as pl
from jax.experimental.pallas import tpu as pltpu


# ---------------------------------------------------------------------------
# Host-side constants (numpy, float64 / int64 — overflow-safe for any L).
#   rfft : X_re = Fc @ x ,  X_im = Fs @ x                  Fc, Fs : (F, L)
#   irfft: y    = Fc.T @ (c*Y_re) + Fs.T @ (c*Y_im)        c = fold weights
# The imaginary parts of the DC / Nyquist bins are killed by the exactly-zero
# sin columns, matching torch/numpy irfft semantics.
# ---------------------------------------------------------------------------
def _dft_tables(L):
    F = L // 2 + 1
    k = np.arange(F, dtype=np.int64)
    n = np.arange(L, dtype=np.int64)
    ang = (2.0 * np.pi / L) * ((k[:, None] * n[None, :]) % L).astype(np.float64)
    scale = 1.0 / np.sqrt(float(L))
    Fc = np.cos(ang) * scale                    # (F, L)
    Fs = -np.sin(ang) * scale                   # (F, L)
    c = np.where((k == 0) | ((L % 2 == 0) & (k == L // 2)), 1.0, 2.0)   # (F,)
    return Fc, Fs, c


def _round_up(a, m):
    return ((a + m - 1) // m) * m


def _pick_batch_tile(B, D, target=256):
    """Smallest batch tile TB (divisor of B) with TB*D a multiple of 128 and
    >= target columns; else the largest 128-aligned divisor; else the full B."""
    aligned = [t for t in range(1, B + 1) if B % t == 0 and (t * D) % 128 == 0]
    for t in aligned:
        if t * D >= target:
            return t
    if aligned:
        return aligned[-1]
    return B


# ---------------------------------------------------------------------------
# Kernel: one lane-dense batch tile per grid step, whole layer fused.
# ---------------------------------------------------------------------------
def _fft_temporal_kernel(x_ref,      # (L, TN)   input tile, native dtype
                         fc_ref,     # (FP, L)   forward DFT, cos       (resident)
                         fs_ref,     # (FP, L)   forward DFT, -sin      (resident)
                         fct_ref,    # (L, FP)   inverse DFT = Fc^T     (resident)
                         fst_ref,    # (L, FP)   inverse DFT = Fs^T     (resident)
                         wre_ref,    # (FP, TN)  c * Re(weight), f32    (resident)
                         wim_ref,    # (FP, TN)  c * Im(weight), f32    (resident)
                         o_ref,      # (L, TN)
                         *, precision):
    x = x_ref[...].astype(fc_ref.dtype)                               # cast once

    # forward real DFT along time (two MXU matmuls, f32 accumulation)
    xr = jnp.dot(fc_ref[...], x, preferred_element_type=jnp.float32,
                 precision=precision)                                  # (FP, TN)
    xi = jnp.dot(fs_ref[...], x, preferred_element_type=jnp.float32,
                 precision=precision)                                  # (FP, TN)

    # per-(frequency, channel) complex multiply in f32 (VPU); fold weights c
    # are already baked into wre/wim.
    wre = wre_ref[...]
    wim = wim_ref[...]
    yr = (xr * wre - xi * wim).astype(fct_ref.dtype)
    yi = (xr * wim + xi * wre).astype(fct_ref.dtype)

    # inverse real DFT back to the time domain (two MXU matmuls)
    y = (jnp.dot(fct_ref[...], yr, preferred_element_type=jnp.float32,
                 precision=precision)
         + jnp.dot(fst_ref[...], yi, preferred_element_type=jnp.float32,
                   precision=precision))                               # (L, TN)

    o_ref[...] = y.astype(o_ref.dtype)


# ---------------------------------------------------------------------------
# Wrapper
# ---------------------------------------------------------------------------
def fftlayer_temporal(x, complex_weight, *, compute_dtype=jnp.bfloat16):
    """x: (B, L, D); complex_weight: (L//2+1, D, 2) [real, imag]."""
    B, L, D = x.shape
    F = L // 2 + 1
    assert complex_weight.shape == (F, D, 2), complex_weight.shape

    is_bf16 = jnp.dtype(compute_dtype) == jnp.dtype(jnp.bfloat16)
    sub = 16 if is_bf16 else 8                  # sublane packing of the FP axis
    FP = _round_up(F, sub)
    padF = FP - F

    # ---- host-built DFT constants (padded rows/cols are exactly zero) ------
    Fc64, Fs64, c64 = _dft_tables(L)
    Fc = jnp.asarray(np.pad(Fc64, ((0, padF), (0, 0))), compute_dtype)      # (FP, L)
    Fs = jnp.asarray(np.pad(Fs64, ((0, padF), (0, 0))), compute_dtype)      # (FP, L)
    FcT = jnp.asarray(np.pad(Fc64.T, ((0, 0), (0, padF))), compute_dtype)   # (L, FP)
    FsT = jnp.asarray(np.pad(Fs64.T, ((0, 0), (0, padF))), compute_dtype)   # (L, FP)

    # fold the spectrum-fold weights into the complex weight (kept in f32)
    c = jnp.asarray(c64, jnp.float32)[:, None]                              # (F, 1)
    wre = jnp.pad(complex_weight[..., 0].astype(jnp.float32) * c, ((0, padF), (0, 0)))
    wim = jnp.pad(complex_weight[..., 1].astype(jnp.float32) * c, ((0, padF), (0, 0)))

    # ---- lane-dense batching: RHS of every matmul is (L, TB*D) -------------
    TB = _pick_batch_tile(B, D)
    TN = TB * D
    N = B * D
    nt = B // TB

    xt = jnp.transpose(x, (1, 0, 2)).reshape(L, N)              # native dtype
    wre_t = jnp.broadcast_to(wre[:, None, :], (FP, TB, D)).reshape(FP, TN)
    wim_t = jnp.broadcast_to(wim[:, None, :], (FP, TB, D)).reshape(FP, TN)

    # ---- VMEM budget / scheduler hints --------------------------------------
    csz = jnp.dtype(compute_dtype).itemsize
    vmem_need = (4 * FP * L * csz              # resident DFT matrices (single buffer)
                 + 2 * FP * TN * 4             # resident folded weights (f32)
                 + 2 * 2 * L * TN * 4          # double-buffered x / out tiles
                 + 5 * FP * TN * 4)            # in-kernel f32 intermediates
    vmem_limit = int(min(max(2 * vmem_need + (4 << 20), 32 << 20), 100 << 20))

    cost = pl.CostEstimate(
        flops=8 * FP * L * N,                  # four (FP,L)x(L,N)-class matmuls
        transcendentals=0,
        bytes_accessed=(x.size + L * N) * x.dtype.itemsize
                       + 4 * FP * L * csz + 2 * FP * TN * 4)

    precision = (jax.lax.Precision.HIGHEST if not is_bf16
                 else jax.lax.Precision.DEFAULT)
    kernel = partial(_fft_temporal_kernel, precision=precision)

    # grid-invariant constants: whole-array, single-buffered, resident in VMEM
    resident = pl.BlockSpec(memory_space=pltpu.MemorySpace.VMEM)

    out2d = pl.pallas_call(
        kernel,
        out_shape=jax.ShapeDtypeStruct((L, N), x.dtype),
        grid=(nt,),
        in_specs=[pl.BlockSpec((L, TN), lambda t: (0, t)),      # x tile (lane-dense)
                  resident, resident, resident, resident,        # Fc, Fs, FcT, FsT
                  resident, resident],                           # wre, wim
        out_specs=pl.BlockSpec((L, TN), lambda t: (0, t)),
        compiler_params=pltpu.CompilerParams(
            dimension_semantics=("parallel",),                   # batch tiles
            vmem_limit_bytes=vmem_limit),
        cost_estimate=cost,
    )(xt, Fc, Fs, FcT, FsT, wre_t, wim_t)

    return jnp.transpose(out2d.reshape(L, B, D), (1, 0, 2))


# ---------------------------------------------------------------------------
# Pure-JAX reference (mirrors the PyTorch forward)
# ---------------------------------------------------------------------------
def fftlayer_temporal_ref(x, complex_weight):
    w = complex_weight[..., 0] + 1j * complex_weight[..., 1]     # (F, D) complex
    X = jnp.fft.rfft(x, axis=1, norm="ortho")
    return jnp.fft.irfft(X * w, n=x.shape[1], axis=1, norm="ortho").astype(x.dtype)


if __name__ == "__main__":
    key = jax.random.PRNGKey(0)
    kx, kw = jax.random.split(key)

    B, L, D = 2, 8, 32
    F = L // 2 + 1
    x = jax.random.normal(kx, (B, L, D), jnp.float32)
    complex_weight = 0.5 * jax.random.normal(kw, (F, D, 2), jnp.float32)

    ref = fftlayer_temporal_ref(x, complex_weight)

    # f32 / HIGHEST-precision path: tight validation of the DFT math.
    out_f32 = jax.block_until_ready(
        fftlayer_temporal(x, complex_weight, compute_dtype=jnp.float32))
    assert out_f32.shape == (B, L, D) and out_f32.dtype == x.dtype
    err32 = float(jnp.max(jnp.abs(out_f32 - ref)))
    assert jnp.allclose(out_f32, ref, atol=1e-3, rtol=1e-3), f"f32 max abs diff {err32}"

    # bf16 MXU path (default performance configuration, f32 accumulation).
    out = jax.block_until_ready(fftlayer_temporal(x, complex_weight))
    assert out.shape == (B, L, D) and out.dtype == x.dtype
    err16 = float(jnp.max(jnp.abs(out - ref)))
    assert jnp.allclose(out, ref, atol=5e-2, rtol=5e-2), f"bf16 max abs diff {err16}"

    print("KERNEL_OK")
</pallas_src>

<mosaic_0001>
module attributes {stable_mosaic.version = 11 : i64} {
  func.func @_fft_temporal_kernel(%arg0: i32, %arg1: memref<8x64xf32, #tpu.memory_space<vmem>>, %arg2: memref<8x8xf32, #tpu.memory_space<vmem>>, %arg3: memref<8x8xf32, #tpu.memory_space<vmem>>, %arg4: memref<8x8xf32, #tpu.memory_space<vmem>>, %arg5: memref<8x8xf32, #tpu.memory_space<vmem>>, %arg6: memref<8x64xf32, #tpu.memory_space<vmem>>, %arg7: memref<8x64xf32, #tpu.memory_space<vmem>>, %arg8: memref<8x64xf32, #tpu.memory_space<vmem>>) attributes {dimension_semantics = [#tpu.dimension_semantics<parallel>], iteration_bounds = array<i64: 1>, scalar_prefetch = 0 : i64, scratch_operands = 0 : i64, tpu.core_type = #tpu.core_type<tc>, window_params = [{transform_indices = @transform_0, window_bounds = array<i64: 8, 64>}, {pipeline_mode = #tpu.pipeline_mode<synchronous>, transform_indices = @transform_1, window_bounds = array<i64: 8, 8>}, {pipeline_mode = #tpu.pipeline_mode<synchronous>, transform_indices = @transform_2, window_bounds = array<i64: 8, 8>}, {pipeline_mode = #tpu.pipeline_mode<synchronous>, transform_indices = @transform_3, window_bounds = array<i64: 8, 8>}, {pipeline_mode = #tpu.pipeline_mode<synchronous>, transform_indices = @transform_4, window_bounds = array<i64: 8, 8>}, {pipeline_mode = #tpu.pipeline_mode<synchronous>, transform_indices = @transform_5, window_bounds = array<i64: 8, 64>}, {pipeline_mode = #tpu.pipeline_mode<synchronous>, transform_indices = @transform_6, window_bounds = array<i64: 8, 64>}, {transform_indices = @transform_7, window_bounds = array<i64: 8, 64>}]} {
    %c0 = arith.constant 0 : index
    %c0_0 = arith.constant 0 : index
    %0 = vector.load %arg1[%c0, %c0_0] : memref<8x64xf32, #tpu.memory_space<vmem>>, vector<8x64xf32>
    %c0_1 = arith.constant 0 : index
    %c0_2 = arith.constant 0 : index
    %1 = vector.load %arg2[%c0_1, %c0_2] : memref<8x8xf32, #tpu.memory_space<vmem>>, vector<8x8xf32>
    %cst = arith.constant dense<0.000000e+00> : vector<8x64xf32>
    %2 = tpu.matmul %1, %0, %cst {dimension_numbers = #tpu.dot_dimension_numbers<[1], [0], [0], [1], [0, 0, 1, 1], [], []>, precision = #tpu.contract_precision<fp32>} : vector<8x8xf32>, vector<8x64xf32>, vector<8x64xf32> -> vector<8x64xf32>
    %c0_3 = arith.constant 0 : index
    %c0_4 = arith.constant 0 : index
    %3 = vector.load %arg3[%c0_3, %c0_4] : memref<8x8xf32, #tpu.memory_space<vmem>>, vector<8x8xf32>
    %cst_5 = arith.constant dense<0.000000e+00> : vector<8x64xf32>
    %4 = tpu.matmul %3, %0, %cst_5 {dimension_numbers = #tpu.dot_dimension_numbers<[1], [0], [0], [1], [0, 0, 1, 1], [], []>, precision = #tpu.contract_precision<fp32>} : vector<8x8xf32>, vector<8x64xf32>, vector<8x64xf32> -> vector<8x64xf32>
    %c0_6 = arith.constant 0 : index
    %c0_7 = arith.constant 0 : index
    %5 = vector.load %arg6[%c0_6, %c0_7] : memref<8x64xf32, #tpu.memory_space<vmem>>, vector<8x64xf32>
    %c0_8 = arith.constant 0 : index
    %c0_9 = arith.constant 0 : index
    %6 = vector.load %arg7[%c0_8, %c0_9] : memref<8x64xf32, #tpu.memory_space<vmem>>, vector<8x64xf32>
    %7 = arith.mulf %2, %5 : vector<8x64xf32>
    %8 = arith.mulf %4, %6 : vector<8x64xf32>
    %9 = arith.subf %7, %8 : vector<8x64xf32>
    %10 = arith.mulf %2, %6 : vector<8x64xf32>
    %11 = arith.mulf %4, %5 : vector<8x64xf32>
    %12 = arith.addf %10, %11 : vector<8x64xf32>
    %c0_10 = arith.constant 0 : index
    %c0_11 = arith.constant 0 : index
    %13 = vector.load %arg4[%c0_10, %c0_11] : memref<8x8xf32, #tpu.memory_space<vmem>>, vector<8x8xf32>
    %cst_12 = arith.constant dense<0.000000e+00> : vector<8x64xf32>
    %14 = tpu.matmul %13, %9, %cst_12 {dimension_numbers = #tpu.dot_dimension_numbers<[1], [0], [0], [1], [0, 0, 1, 1], [], []>, precision = #tpu.contract_precision<fp32>} : vector<8x8xf32>, vector<8x64xf32>, vector<8x64xf32> -> vector<8x64xf32>
    %c0_13 = arith.constant 0 : index
    %c0_14 = arith.constant 0 : index
    %15 = vector.load %arg5[%c0_13, %c0_14] : memref<8x8xf32, #tpu.memory_space<vmem>>, vector<8x8xf32>
    %cst_15 = arith.constant dense<0.000000e+00> : vector<8x64xf32>
    %16 = tpu.matmul %15, %12, %cst_15 {dimension_numbers = #tpu.dot_dimension_numbers<[1], [0], [0], [1], [0, 0, 1, 1], [], []>, precision = #tpu.contract_precision<fp32>} : vector<8x8xf32>, vector<8x64xf32>, vector<8x64xf32> -> vector<8x64xf32>
    %17 = arith.addf %14, %16 : vector<8x64xf32>
    %c0_16 = arith.constant 0 : index
    %c0_17 = arith.constant 0 : index
    %18 = vector.load %arg8[%c0_16, %c0_17] : memref<8x64xf32, #tpu.memory_space<vmem>>, vector<8x64xf32>
    tpu.vector_store %arg8[%c0_16, %c0_17], %17 {strides = array<i32>} : memref<8x64xf32, #tpu.memory_space<vmem>>, vector<8x64xf32>,
    return
  }
  func.func @transform_0(%arg0: i32) -> (i32, i32) {
    %c0_i32 = arith.constant 0 : i32
    %c0_i32_0 = arith.constant 0 : i32
    return %c0_i32, %arg0 : i32, i32
  }
  func.func @transform_1(%arg0: i32) -> (i32, i32) {
    %c0_i32 = arith.constant 0 : i32
    %c0_i32_0 = arith.constant 0 : i32
    %c0_i32_1 = arith.constant 0 : i32
    return %c0_i32, %c0_i32_0 : i32, i32
  }
  func.func @transform_2(%arg0: i32) -> (i32, i32) {
    %c0_i32 = arith.constant 0 : i32
    %c0_i32_0 = arith.constant 0 : i32
    %c0_i32_1 = arith.constant 0 : i32
    return %c0_i32, %c0_i32_0 : i32, i32
  }
  func.func @transform_3(%arg0: i32) -> (i32, i32) {
    %c0_i32 = arith.constant 0 : i32
    %c0_i32_0 = arith.constant 0 : i32
    %c0_i32_1 = arith.constant 0 : i32
    return %c0_i32, %c0_i32_0 : i32, i32
  }
  func.func @transform_4(%arg0: i32) -> (i32, i32) {
    %c0_i32 = arith.constant 0 : i32
    %c0_i32_0 = arith.constant 0 : i32
    %c0_i32_1 = arith.constant 0 : i32
    return %c0_i32, %c0_i32_0 : i32, i32
  }
  func.func @transform_5(%arg0: i32) -> (i32, i32) {
    %c0_i32 = arith.constant 0 : i32
    %c0_i32_0 = arith.constant 0 : i32
    %c0_i32_1 = arith.constant 0 : i32
    return %c0_i32, %c0_i32_0 : i32, i32
  }
  func.func @transform_6(%arg0: i32) -> (i32, i32) {
    %c0_i32 = arith.constant 0 : i32
    %c0_i32_0 = arith.constant 0 : i32
    %c0_i32_1 = arith.constant 0 : i32
    return %c0_i32, %c0_i32_0 : i32, i32
  }
  func.func @transform_7(%arg0: i32) -> (i32, i32) {
    %c0_i32 = arith.constant 0 : i32
    %c0_i32_0 = arith.constant 0 : i32
    return %c0_i32, %arg0 : i32, i32
  }
}

</mosaic_0001>

<llo_original>
// kernel: tpu_custom_call.1
$region0: #{tpu_custom_call.1}
  #allocation0 [shape = 'u32[]', space=smem, size = 0x4, offset = 0x4, fixed_abs, tag = 'smem constant byte address 0x4 - core index']
  #allocation1 [shape = 'u32[144,128]{1,0:T(1,128)}', space=vmem, size = 0x12000, scoped, tag = 'internal scratch']
  %s0 = inlined_call_operand.hbm [shape: f32[8,64], index: 0, kind: input, shape index: {}]
  %s1 = inlined_call_operand.hbm [shape: f32[8,8], index: 1, kind: input, shape index: {}]
  %s2 = inlined_call_operand.hbm [shape: f32[8,8], index: 2, kind: input, shape index: {}]
  %s3 = inlined_call_operand.vmem [shape: f32[8,8], index: 3, kind: input, shape index: {}]
  %s4 = inlined_call_operand.hbm [shape: f32[8,8], index: 4, kind: input, shape index: {}]
  %s5 = inlined_call_operand.vmem [shape: f32[8,64], index: 5, kind: input, shape index: {}]
  %s6 = inlined_call_operand.hbm [shape: f32[8,64], index: 6, kind: input, shape index: {}]
  %s7 = inlined_call_operand.hbm [shape: f32[8,64], index: 7, kind: output, shape index: {}]
  %s8 = sld [smem:[#allocation0]]
  $region58: #{tpu_custom_call.1} parent=0
    _
  %s10 = ssub.s32 1, %s8
  %s11 = scalar_select 0, %s10, %s8
  $region1: #{tpu_custom_call.1} parent=0
    #allocation2 [shape = 'u8[4096]{0}', space=vmem, size = 0x1000, scoped, tag = 'input window, operand 0, single buffered']
    #allocation3 [shape = 's32[1]{0}', space=sflag, size = 0x4, scoped, tag = 'scoped memory for tpu_custom_call.1']
    #allocation4 [shape = 's32[1]{0}', space=sflag, size = 0x4, scoped, tag = 'scoped memory for tpu_custom_call.1']
    #allocation5 [shape = 'u8[4096]{0}', space=vmem, size = 0x1000, scoped, tag = 'input window, operand 1, single buffered']
    #allocation6 [shape = 's32[1]{0}', space=sflag, size = 0x4, scoped, tag = 'scoped memory for tpu_custom_call.1']
    #allocation7 [shape = 'u8[4096]{0}', space=vmem, size = 0x1000, scoped, tag = 'input window, operand 2, single buffered']
    #allocation8 [shape = 'u8[4096]{0}', space=vmem, size = 0x1000, scoped, tag = 'input window, operand 4, single buffered']
    #allocation9 [shape = 's32[1]{0}', space=sflag, size = 0x4, scoped, tag = 'scoped memory for tpu_custom_call.1']
    #allocation10 [shape = 'u8[4096]{0}', space=vmem, size = 0x1000, scoped, tag = 'input window, operand 6, single buffered']
    #allocation11 [shape = 'u8[4096]{0}', space=vmem, size = 0x1000, scoped, tag = 'output window, operand 0, single buffered']
    %12 = vsyncpa [#allocation3], 0
    %13 = vsyncpa [#allocation6], 0
    %14 = vsyncpa [#allocation9], 0
    %15 = vsyncpa [#allocation4], 0
    // Predicated region
    $region2: #{tpu_custom_call.1} parent=1 // pred_check
      _
    $region3: #{tpu_custom_call.1} parent=1 // pred_check_branch
      %17 = sbr.rel (0) target = $region5
    $region4: #{tpu_custom_call.1} parent=1 // pred_region
      %s19 = ssub.s32 128, 128
      %20 = vsyncadd [#allocation3], %s19
      %s22 = sshll.u32 [#allocation2], 4
      %s23 = int_to_ptr.vmem [resolvable:$true] %s22
      %25 = dma.hbm_to_vmem [thread:$0]  %s0, 128, %s23, [#allocation3]
    $region5: #{tpu_custom_call.1} parent=1 // pred_fallthru
      _
    // Predicated region
    $region6: #{tpu_custom_call.1} parent=1 // pred_check
      _
    $region7: #{tpu_custom_call.1} parent=1 // pred_check_branch
      %27 = sbr.rel (0) target = $region9
    $region8: #{tpu_custom_call.1} parent=1 // pred_region
      %s29 = ssub.s32 128, 128
      %30 = vsyncadd [#allocation6], %s29
      %s32 = sshll.u32 [#allocation5], 4
      %s33 = int_to_ptr.vmem [resolvable:$true] %s32
      %35 = dma.hbm_to_vmem [thread:$0]  %s1, 128, %s33, [#allocation6]
    $region9: #{tpu_custom_call.1} parent=1 // pred_fallthru
      _
    // Predicated region
    $region10: #{tpu_custom_call.1} parent=1 // pred_check
      _
    $region11: #{tpu_custom_call.1} parent=1 // pred_check_branch
      %37 = sbr.rel (0) target = $region13
    $region12: #{tpu_custom_call.1} parent=1 // pred_region
      %s39 = ssub.s32 128, 128
      %40 = vsyncadd [#allocation6], %s39
      %s42 = sshll.u32 [#allocation7], 4
      %s43 = int_to_ptr.vmem [resolvable:$true] %s42
      %45 = dma.hbm_to_vmem [thread:$0]  %s2, 128, %s43, [#allocation6]
    $region13: #{tpu_custom_call.1} parent=1 // pred_fallthru
      _
    // Predicated region
    $region14: #{tpu_custom_call.1} parent=1 // pred_check
      _
    $region15: #{tpu_custom_call.1} parent=1 // pred_check_branch
      %47 = sbr.rel (0) target = $region17
    $region16: #{tpu_custom_call.1} parent=1 // pred_region
      _
    $region17: #{tpu_custom_call.1} parent=1 // pred_fallthru
      _
    // Predicated region
    $region18: #{tpu_custom_call.1} parent=1 // pred_check
      _
    $region19: #{tpu_custom_call.1} parent=1 // pred_check_branch
      %49 = sbr.rel (0) target = $region21
    $region20: #{tpu_custom_call.1} parent=1 // pred_region
      %s51 = ssub.s32 128, 128
      %52 = vsyncadd [#allocation9], %s51
      %s54 = sshll.u32 [#allocation8], 4
      %s55 = int_to_ptr.vmem [resolvable:$true] %s54
      %57 = dma.hbm_to_vmem [thread:$0]  %s4, 128, %s55, [#allocation9]
    $region21: #{tpu_custom_call.1} parent=1 // pred_fallthru
      _
    // Predicated region
    $region22: #{tpu_custom_call.1} parent=1 // pred_check
      _
    $region23: #{tpu_custom_call.1} parent=1 // pred_check_branch
      %59 = sbr.rel (0) target = $region25
    $region24: #{tpu_custom_call.1} parent=1 // pred_region
      _
    $region25: #{tpu_custom_call.1} parent=1 // pred_fallthru
      _
    // Predicated region
    $region26: #{tpu_custom_call.1} parent=1 // pred_check
      _
    $region27: #{tpu_custom_call.1} parent=1 // pred_check_branch
      %61 = sbr.rel (0) target = $region29
    $region28: #{tpu_custom_call.1} parent=1 // pred_region
      %s63 = ssub.s32 128, 128
      %64 = vsyncadd [#allocation9], %s63
      %s66 = sshll.u32 [#allocation10], 4
      %s67 = int_to_ptr.vmem [resolvable:$true] %s66
      %69 = dma.hbm_to_vmem [thread:$0]  %s6, 128, %s67, [#allocation9]
    $region29: #{tpu_custom_call.1} parent=1 // pred_fallthru
      _
    // Predicated region
    $region30: #{tpu_custom_call.1} parent=1 // pred_check
      _
    $region31: #{tpu_custom_call.1} parent=1 // pred_check_branch
      %71 = sbr.rel (0) target = $region33
    $region32: #{tpu_custom_call.1} parent=1 // pred_region
      %72 = dma.done [#allocation3], 128
    $region33: #{tpu_custom_call.1} parent=1 // pred_fallthru
      _
    // Predicated region
    $region34: #{tpu_custom_call.1} parent=1 // pred_check
      _
    $region35: #{tpu_custom_call.1} parent=1 // pred_check_branch
      %74 = sbr.rel (0) target = $region37
    $region36: #{tpu_custom_call.1} parent=1 // pred_region
      %75 = dma.done [#allocation6], 128
    $region37: #{tpu_custom_call.1} parent=1 // pred_fallthru
      _
    // Predicated region
    $region38: #{tpu_custom_call.1} parent=1 // pred_check
      _
    $region39: #{tpu_custom_call.1} parent=1 // pred_check_branch
      %77 = sbr.rel (0) target = $region41
    $region40: #{tpu_custom_call.1} parent=1 // pred_region
      %78 = dma.done [#allocation6], 128
    $region41: #{tpu_custom_call.1} parent=1 // pred_fallthru
      _
    // Predicated region
    $region42: #{tpu_custom_call.1} parent=1 // pred_check
      _
    $region43: #{tpu_custom_call.1} parent=1 // pred_check_branch
      %80 = sbr.rel (0) target = $region45
    $region44: #{tpu_custom_call.1} parent=1 // pred_region
      %81 = dma.done [#allocation9], 128
    $region45: #{tpu_custom_call.1} parent=1 // pred_fallthru
      _
    // Predicated region
    $region46: #{tpu_custom_call.1} parent=1 // pred_check
      _
    $region47: #{tpu_custom_call.1} parent=1 // pred_check_branch
      %83 = sbr.rel (0) target = $region49
    $region48: #{tpu_custom_call.1} parent=1 // pred_region
      %84 = dma.done [#allocation9], 128
    $region49: #{tpu_custom_call.1} parent=1 // pred_fallthru
      _
    %v85 = vld [vmem:[#allocation2] sm:$0xff]
    %v86 = vld [vmem:[#allocation5] sm:$0xff]
    %vm87 = vcmask 64512
    %v89 = vsel %vm87, %v86, 0
    %91 = vmatprep.subr.mxu0 0.0
    %v92 = vand.u32 %v85, 4294901760
    %93 = vmatpush1.msra.mxu0 %v92
    %94 = vmatprep.subr.mxu0 0.0
    %95 = vmatpush1.msra.mxu0 0.0
    %96 = vmatprep.subr.mxu0 0.0
    %97 = vmatpush1.msra.mxu0 0.0
    %98 = vmatprep.subr.mxu0 0.0
    %99 = vmatpush1.msra.mxu0 0.0
    %100 = vmatprep.subr.mxu0 0.0
    %101 = vmatpush1.msra.mxu0 0.0
    %102 = vmatprep.subr.mxu0 0.0
    %103 = vmatpush1.msra.mxu0 0.0
    %104 = vmatprep.subr.mxu0 0.0
    %105 = vmatpush1.msra.mxu0 0.0
    %106 = vmatprep.subr.mxu0 0.0
    %107 = vmatpush1.msra.mxu0 0.0
    %108 = vmatprep.subr.mxu0 0.0
    %109 = vmatpush1.msra.mxu0 0.0
    %110 = vmatprep.subr.mxu0 0.0
    %111 = vmatpush1.msra.mxu0 0.0
    %112 = vmatprep.subr.mxu0 0.0
    %113 = vmatpush1.msra.mxu0 0.0
    %114 = vmatprep.subr.mxu0 0.0
    %115 = vmatpush1.msra.mxu0 0.0
    %116 = vmatprep.subr.mxu0 0.0
    %117 = vmatpush1.msra.mxu0 0.0
    %118 = vmatprep.subr.mxu0 0.0
    %119 = vmatpush1.msra.mxu0 0.0
    %120 = vmatprep.subr.mxu0 0.0
    %121 = vmatpush1.msra.mxu0 0.0
    %122 = vmatprep.subr.mxu0 0.0
    %123 = vmatpush1.msra.mxu0 0.0
    %124 = vmatprep.subr.mxu0 0.0
    %125 = vmatpush1.msra.mxu0 0.0
    %126 = vmatprep.subr.mxu0 0.0
    %127 = vmatpush1.msra.mxu0 0.0
    %128 = vmatprep.subr.mxu0 0.0
    %129 = vmatpush1.msra.mxu0 0.0
    %130 = vmatprep.subr.mxu0 0.0
    %131 = vmatpush1.msra.mxu0 0.0
    %132 = vmatprep.subr.mxu0 0.0
    %133 = vmatpush1.msra.mxu0 0.0
    %134 = vmatprep.subr.mxu0 0.0
    %135 = vmatpush1.msra.mxu0 0.0
    %136 = vmatprep.subr.mxu0 0.0
    %137 = vmatpush1.msra.mxu0 0.0
    %138 = vmatprep.subr.mxu0 0.0
    %139 = vmatpush1.msra.mxu0 0.0
    %140 = vmatprep.subr.mxu0 0.0
    %141 = vmatpush1.msra.mxu0 0.0
    %142 = vmatprep.subr.mxu0 0.0
    %143 = vmatpush1.msra.mxu0 0.0
    %144 = vmatprep.subr.mxu0 0.0
    %145 = vmatpush1.msra.mxu0 0.0
    %146 = vmatprep.subr.mxu0 0.0
    %147 = vmatpush1.msra.mxu0 0.0
    %148 = vmatprep.subr.mxu0 0.0
    %149 = vmatpush1.msra.mxu0 0.0
    %150 = vmatprep.subr.mxu0 0.0
    %151 = vmatpush1.msra.mxu0 0.0
    %152 = vmatprep.subr.mxu0 0.0
    %153 = vmatpush1.msra.mxu0 0.0
    %154 = vmatprep.subr.mxu0 0.0
    %155 = vmatpush1.msra.mxu0 0.0
    %156 = vmatprep.mubr.f32.mxu0 0.0
    %v157 = vand.u32 %v89, 4294901760
    %v158 = vsub.f32 %v89, %v157
    %v159 = vand.u32 %v158, 4294901760
    %v160 = vsub.f32 %v158, %v159
    %v161 = vand.u32 %v160, 4294901760
    %162 = vmatmul.mubr.f32.gmra.mrb[0].mxu0 %v161
    %v163 = vpop.f32.mrb[0].mxu0
    %v164 = vadd.f32 0.0, %v163
    %v165 = vpop.f32.mrb[0].mxu0
    %166 = vdwg.mxu0
    %167 = vmatprep.subr.mxu0 0.0
    %v168 = vand.u32 %v85, 4294901760
    %v169 = vsub.f32 %v85, %v168
    %v170 = vand.u32 %v169, 4294901760
    %v171 = vsub.f32 %v169, %v170
    %v172 = vand.u32 %v171, 4294901760
    %173 = vmatpush1.msra.mxu0 %v172
    %174 = vmatprep.subr.mxu0 0.0
    %175 = vmatpush1.msra.mxu0 0.0
    %176 = vmatprep.subr.mxu0 0.0
    %177 = vmatpush1.msra.mxu0 0.0
    %178 = vmatprep.subr.mxu0 0.0
    %179 = vmatpush1.msra.mxu0 0.0
    %180 = vmatprep.subr.mxu0 0.0
    %181 = vmatpush1.msra.mxu0 0.0
    %182 = vmatprep.subr.mxu0 0.0
    %183 = vmatpush1.msra.mxu0 0.0
    %184 = vmatprep.subr.mxu0 0.0
    %185 = vmatpush1.msra.mxu0 0.0
    %186 = vmatprep.subr.mxu0 0.0
    %187 = vmatpush1.msra.mxu0 0.0
    %188 = vmatprep.subr.mxu0 0.0
    %189 = vmatpush1.msra.mxu0 0.0
    %190 = vmatprep.subr.mxu0 0.0
    %191 = vmatpush1.msra.mxu0 0.0
    %192 = vmatprep.subr.mxu0 0.0
    %193 = vmatpush1.msra.mxu0 0.0
    %194 = vmatprep.subr.mxu0 0.0
    %195 = vmatpush1.msra.mxu0 0.0
    %196 = vmatprep.subr.mxu0 0.0
    %197 = vmatpush1.msra.mxu0 0.0
    %198 = vmatprep.subr.mxu0 0.0
    %199 = vmatpush1.msra.mxu0 0.0
    %200 = vmatprep.subr.mxu0 0.0
    %201 = vmatpush1.msra.mxu0 0.0
    %202 = vmatprep.subr.mxu0 0.0
    %203 = vmatpush1.msra.mxu0 0.0
    %204 = vmatprep.subr.mxu0 0.0
    %205 = vmatpush1.msra.mxu0 0.0
    %206 = vmatprep.subr.mxu0 0.0
    %207 = vmatpush1.msra.mxu0 0.0
    %208 = vmatprep.subr.mxu0 0.0
    %209 = vmatpush1.msra.mxu0 0.0
    %210 = vmatprep.subr.mxu0 0.0
    %211 = vmatpush1.msra.mxu0 0.0
    %212 = vmatprep.subr.mxu0 0.0
    %213 = vmatpush1.msra.mxu0 0.0
    %214 = vmatprep.subr.mxu0 0.0
    %215 = vmatpush1.msra.mxu0 0.0
    %216 = vmatprep.subr.mxu0 0.0
    %217 = vmatpush1.msra.mxu0 0.0
    %218 = vmatprep.subr.mxu0 0.0
    %219 = vmatpush1.msra.mxu0 0.0
    %220 = vmatprep.subr.mxu0 0.0
    %221 = vmatpush1.msra.mxu0 0.0
    %222 = vmatprep.subr.mxu0 0.0
    %223 = vmatpush1.msra.mxu0 0.0
    %224 = vmatprep.subr.mxu0 0.0
    %225 = vmatpush1.msra.mxu0 0.0
    %226 = vmatprep.subr.mxu0 0.0
    %227 = vmatpush1.msra.mxu0 0.0
    %228 = vmatprep.subr.mxu0 0.0
    %229 = vmatpush1.msra.mxu0 0.0
    %230 = vmatprep.subr.mxu0 0.0
    %231 = vmatpush1.msra.mxu0 0.0
    %232 = vmatprep.subr.mxu0 0.0
    %233 = vmatpush1.msra.mxu0 0.0
    %234 = vmatprep.subr.mxu0 0.0
    %235 = vmatpush1.msra.mxu0 0.0
    %236 = vmatprep.mubr.f32.mxu0 0.0
    %v237 = vand.u32 %v89, 4294901760
    %238 = vmatmul.mubr.f32.gmra.mrb[0].mxu0 %v237
    %v239 = vpop.f32.mrb[0].mxu0
    %v240 = vadd.f32 %v164, %v239
    %v241 = vpop.f32.mrb[0].mxu0
    %242 = vdwg.mxu0
    %243 = vmatprep.subr.mxu0 0.0
    %v244 = vand.u32 %v85, 4294901760
    %v245 = vsub.f32 %v85, %v244
    %246 = vmatpush1.msra.mxu0 %v245
    %247 = vmatprep.subr.mxu0 0.0
    %248 = vmatpush1.msra.mxu0 0.0
    %249 = vmatprep.subr.mxu0 0.0
    %250 = vmatpush1.msra.mxu0 0.0
    %251 = vmatprep.subr.mxu0 0.0
    %252 = vmatpush1.msra.mxu0 0.0
    %253 = vmatprep.subr.mxu0 0.0
    %254 = vmatpush1.msra.mxu0 0.0
    %255 = vmatprep.subr.mxu0 0.0
    %256 = vmatpush1.msra.mxu0 0.0
    %257 = vmatprep.subr.mxu0 0.0
    %258 = vmatpush1.msra.mxu0 0.0
    %259 = vmatprep.subr.mxu0 0.0
    %260 = vmatpush1.msra.mxu0 0.0
    %261 = vmatprep.subr.mxu0 0.0
    %262 = vmatpush1.msra.mxu0 0.0
    %263 = vmatprep.subr.mxu0 0.0
    %264 = vmatpush1.msra.mxu0 0.0
    %265 = vmatprep.subr.mxu0 0.0
    %266 = vmatpush1.msra.mxu0 0.0
    %267 = vmatprep.subr.mxu0 0.0
    %268 = vmatpush1.msra.mxu0 0.0
    %269 = vmatprep.subr.mxu0 0.0
    %270 = vmatpush1.msra.mxu0 0.0
    %271 = vmatprep.subr.mxu0 0.0
    %272 = vmatpush1.msra.mxu0 0.0
    %273 = vmatprep.subr.mxu0 0.0
    %274 = vmatpush1.msra.mxu0 0.0
    %275 = vmatprep.subr.mxu0 0.0
    %276 = vmatpush1.msra.mxu0 0.0
    %277 = vmatprep.subr.mxu0 0.0
    %278 = vmatpush1.msra.mxu0 0.0
    %279 = vmatprep.subr.mxu0 0.0
    %280 = vmatpush1.msra.mxu0 0.0
    %281 = vmatprep.subr.mxu0 0.0
    %282 = vmatpush1.msra.mxu0 0.0
    %283 = vmatprep.subr.mxu0 0.0
    %284 = vmatpush1.msra.mxu0 0.0
    %285 = vmatprep.subr.mxu0 0.0
    %286 = vmatpush1.msra.mxu0 0.0
    %287 = vmatprep.subr.mxu0 0.0
    %288 = vmatpush1.msra.mxu0 0.0
    %289 = vmatprep.subr.mxu0 0.0
    %290 = vmatpush1.msra.mxu0 0.0
    %291 = vmatprep.subr.mxu0 0.0
    %292 = vmatpush1.msra.mxu0 0.0
    %293 = vmatprep.subr.mxu0 0.0
    %294 = vmatpush1.msra.mxu0 0.0
    %295 = vmatprep.subr.mxu0 0.0
    %296 = vmatpush1.msra.mxu0 0.0
    %297 = vmatprep.subr.mxu0 0.0
    %298 = vmatpush1.msra.mxu0 0.0
    %299 = vmatprep.subr.mxu0 0.0
    %300 = vmatpush1.msra.mxu0 0.0
    %301 = vmatprep.subr.mxu0 0.0
    %302 = vmatpush1.msra.mxu0 0.0
    %303 = vmatprep.subr.mxu0 0.0
    %304 = vmatpush1.msra.mxu0 0.0
    %305 = vmatprep.subr.mxu0 0.0
    %306 = vmatpush1.msra.mxu0 0.0
    %307 = vmatprep.subr.mxu0 0.0
    %308 = vmatpush1.msra.mxu0 0.0
    %309 = vmatprep.mubr.f32.mxu0 0.0
    %v310 = vand.u32 %v89, 4294901760
    %v311 = vsub.f32 %v89, %v310
    %312 = vmatmul.mubr.f32.gmra.mrb[0].mxu0 %v311
    %v313 = vpop.f32.mrb[0].mxu0
    %v314 = vadd.f32 %v240, %v313
    %v315 = vpop.f32.mrb[0].mxu0
    %316 = vdwg.mxu0
    %317 = vmatprep.subr.mxu0 0.0
    %v318 = vand.u32 %v85, 4294901760
    %319 = vmatpush1.msra.mxu0 %v318
    %320 = vmatprep.subr.mxu0 0.0
    %321 = vmatpush1.msra.mxu0 0.0
    %322 = vmatprep.subr.mxu0 0.0
    %323 = vmatpush1.msra.mxu0 0.0
    %324 = vmatprep.subr.mxu0 0.0
    %325 = vmatpush1.msra.mxu0 0.0
    %326 = vmatprep.subr.mxu0 0.0
    %327 = vmatpush1.msra.mxu0 0.0
    %328 = vmatprep.subr.mxu0 0.0
    %329 = vmatpush1.msra.mxu0 0.0
    %330 = vmatprep.subr.mxu0 0.0
    %331 = vmatpush1.msra.mxu0 0.0
    %332 = vmatprep.subr.mxu0 0.0
    %333 = vmatpush1.msra.mxu0 0.0
    %334 = vmatprep.subr.mxu0 0.0
    %335 = vmatpush1.msra.mxu0 0.0
    %336 = vmatprep.subr.mxu0 0.0
    %337 = vmatpush1.msra.mxu0 0.0
    %338 = vmatprep.subr.mxu0 0.0
    %339 = vmatpush1.msra.mxu0 0.0
    %340 = vmatprep.subr.mxu0 0.0
    %341 = vmatpush1.msra.mxu0 0.0
    %342 = vmatprep.subr.mxu0 0.0
    %343 = vmatpush1.msra.mxu0 0.0
    %344 = vmatprep.subr.mxu0 0.0
    %345 = vmatpush1.msra.mxu0 0.0
    %346 = vmatprep.subr.mxu0 0.0
    %347 = vmatpush1.msra.mxu0 0.0
    %348 = vmatprep.subr.mxu0 0.0
    %349 = vmatpush1.msra.mxu0 0.0
    %350 = vmatprep.subr.mxu0 0.0
    %351 = vmatpush1.msra.mxu0 0.0
    %352 = vmatprep.subr.mxu0 0.0
    %353 = vmatpush1.msra.mxu0 0.0
    %354 = vmatprep.subr.mxu0 0.0
    %355 = vmatpush1.msra.mxu0 0.0
    %356 = vmatprep.subr.mxu0 0.0
    %357 = vmatpush1.msra.mxu0 0.0
    %358 = vmatprep.subr.mxu0 0.0
    %359 = vmatpush1.msra.mxu0 0.0
    %360 = vmatprep.subr.mxu0 0.0
    %361 = vmatpush1.msra.mxu0 0.0
    %362 = vmatprep.subr.mxu0 0.0
    %363 = vmatpush1.msra.mxu0 0.0
    %364 = vmatprep.subr.mxu0 0.0
    %365 = vmatpush1.msra.mxu0 0.0
    %366 = vmatprep.subr.mxu0 0.0
    %367 = vmatpush1.msra.mxu0 0.0
    %368 = vmatprep.subr.mxu0 0.0
    %369 = vmatpush1.msra.mxu0 0.0
    %370 = vmatprep.subr.mxu0 0.0
    %371 = vmatpush1.msra.mxu0 0.0
    %372 = vmatprep.subr.mxu0 0.0
    %373 = vmatpush1.msra.mxu0 0.0
    %374 = vmatprep.subr.mxu0 0.0
    %375 = vmatpush1.msra.mxu0 0.0
    %376 = vmatprep.subr.mxu0 0.0
    %377 = vmatpush1.msra.mxu0 0.0
    %378 = vmatprep.subr.mxu0 0.0
    %379 = vmatpush1.msra.mxu0 0.0
    %380 = vmatprep.subr.mxu0 0.0
    %381 = vmatpush1.msra.mxu0 0.0
    %382 = vmatprep.mubr.f32.mxu0 0.0
    %v383 = vand.u32 %v89, 4294901760
    %v384 = vsub.f32 %v89, %v383
    %v385 = vand.u32 %v384, 4294901760
    %386 = vmatmul.mubr.f32.gmra.mrb[0].mxu0 %v385
    %v387 = vpop.f32.mrb[0].mxu0
    %v388 = vadd.f32 %v314, %v387
    %v389 = vpop.f32.mrb[0].mxu0
    %390 = vdwg.mxu0
    %391 = vmatprep.subr.mxu0 0.0
    %v392 = vand.u32 %v85, 4294901760
    %v393 = vsub.f32 %v85, %v392
    %v394 = vand.u32 %v393, 4294901760
    %395 = vmatpush1.msra.mxu0 %v394
    %396 = vmatprep.subr.mxu0 0.0
    %397 = vmatpush1.msra.mxu0 0.0
    %398 = vmatprep.subr.mxu0 0.0
    %399 = vmatpush1.msra.mxu0 0.0
    %400 = vmatprep.subr.mxu0 0.0
    %401 = vmatpush1.msra.mxu0 0.0
    %402 = vmatprep.subr.mxu0 0.0
    %403 = vmatpush1.msra.mxu0 0.0
    %404 = vmatprep.subr.mxu0 0.0
    %405 = vmatpush1.msra.mxu0 0.0
    %406 = vmatprep.subr.mxu0 0.0
    %407 = vmatpush1.msra.mxu0 0.0
    %408 = vmatprep.subr.mxu0 0.0
    %409 = vmatpush1.msra.mxu0 0.0
    %410 = vmatprep.subr.mxu0 0.0
    %411 = vmatpush1.msra.mxu0 0.0
    %412 = vmatprep.subr.mxu0 0.0
    %413 = vmatpush1.msra.mxu0 0.0
    %414 = vmatprep.subr.mxu0 0.0
    %415 = vmatpush1.msra.mxu0 0.0
    %416 = vmatprep.subr.mxu0 0.0
    %417 = vmatpush1.msra.mxu0 0.0
    %418 = vmatprep.subr.mxu0 0.0
    %419 = vmatpush1.msra.mxu0 0.0
    %420 = vmatprep.subr.mxu0 0.0
    %421 = vmatpush1.msra.mxu0 0.0
    %422 = vmatprep.subr.mxu0 0.0
    %423 = vmatpush1.msra.mxu0 0.0
    %424 = vmatprep.subr.mxu0 0.0
    %425 = vmatpush1.msra.mxu0 0.0
    %426 = vmatprep.subr.mxu0 0.0
    %427 = vmatpush1.msra.mxu0 0.0
    %428 = vmatprep.subr.mxu0 0.0
    %429 = vmatpush1.msra.mxu0 0.0
    %430 = vmatprep.subr.mxu0 0.0
    %431 = vmatpush1.msra.mxu0 0.0
    %432 = vmatprep.subr.mxu0 0.0
    %433 = vmatpush1.msra.mxu0 0.0
    %434 = vmatprep.subr.mxu0 0.0
    %435 = vmatpush1.msra.mxu0 0.0
    %436 = vmatprep.subr.mxu0 0.0
    %437 = vmatpush1.msra.mxu0 0.0
    %438 = vmatprep.subr.mxu0 0.0
    %439 = vmatpush1.msra.mxu0 0.0
    %440 = vmatprep.subr.mxu0 0.0
    %441 = vmatpush1.msra.mxu0 0.0
    %442 = vmatprep.subr.mxu0 0.0
    %443 = vmatpush1.msra.mxu0 0.0
    %444 = vmatprep.subr.mxu0 0.0
    %445 = vmatpush1.msra.mxu0 0.0
    %446 = vmatprep.subr.mxu0 0.0
    %447 = vmatpush1.msra.mxu0 0.0
    %448 = vmatprep.subr.mxu0 0.0
    %449 = vmatpush1.msra.mxu0 0.0
    %450 = vmatprep.subr.mxu0 0.0
    %451 = vmatpush1.msra.mxu0 0.0
    %452 = vmatprep.subr.mxu0 0.0
    %453 = vmatpush1.msra.mxu0 0.0
    %454 = vmatprep.subr.mxu0 0.0
    %455 = vmatpush1.msra.mxu0 0.0
    %456 = vmatprep.subr.mxu0 0.0
    %457 = vmatpush1.msra.mxu0 0.0
    %458 = vmatprep.mubr.f32.mxu0 0.0
    %v459 = vand.u32 %v89, 4294901760
    %460 = vmatmul.mubr.f32.gmra.mrb[0].mxu0 %v459
    %v461 = vpop.f32.mrb[0].mxu0
    %v462 = vadd.f32 %v388, %v461
    %v463 = vpop.f32.mrb[0].mxu0
    %464 = vdwg.mxu0
    %465 = vmatprep.subr.mxu0 0.0
    %v466 = vand.u32 %v85, 4294901760
    %467 = vmatpush1.msra.mxu0 %v466
    %468 = vmatprep.subr.mxu0 0.0
    %469 = vmatpush1.msra.mxu0 0.0
    %470 = vmatprep.subr.mxu0 0.0
    %471 = vmatpush1.msra.mxu0 0.0
    %472 = vmatprep.subr.mxu0 0.0
    %473 = vmatpush1.msra.mxu0 0.0
    %474 = vmatprep.subr.mxu0 0.0
    %475 = vmatpush1.msra.mxu0 0.0
    %476 = vmatprep.subr.mxu0 0.0
    %477 = vmatpush1.msra.mxu0 0.0
    %478 = vmatprep.subr.mxu0 0.0
    %479 = vmatpush1.msra.mxu0 0.0
    %480 = vmatprep.subr.mxu0 0.0
    %481 = vmatpush1.msra.mxu0 0.0
    %482 = vmatprep.subr.mxu0 0.0
    %483 = vmatpush1.msra.mxu0 0.0
    %484 = vmatprep.subr.mxu0 0.0
    %485 = vmatpush1.msra.mxu0 0.0
    %486 = vmatprep.subr.mxu0 0.0
    %487 = vmatpush1.msra.mxu0 0.0
    %488 = vmatprep.subr.mxu0 0.0
    %489 = vmatpush1.msra.mxu0 0.0
    %490 = vmatprep.subr.mxu0 0.0
    %491 = vmatpush1.msra.mxu0 0.0
    %492 = vmatprep.subr.mxu0 0.0
    %493 = vmatpush1.msra.mxu0 0.0
    %494 = vmatprep.subr.mxu0 0.0
    %495 = vmatpush1.msra.mxu0 0.0
    %496 = vmatprep.subr.mxu0 0.0
    %497 = vmatpush1.msra.mxu0 0.0
    %498 = vmatprep.subr.mxu0 0.0
    %499 = vmatpush1.msra.mxu0 0.0
    %500 = vmatprep.subr.mxu0 0.0
    %501 = vmatpush1.msra.mxu0 0.0
    %502 = vmatprep.subr.mxu0 0.0
    %503 = vmatpush1.msra.mxu0 0.0
    %504 = vmatprep.subr.mxu0 0.0
    %505 = vmatpush1.msra.mxu0 0.0
    %506 = vmatprep.subr.mxu0 0.0
    %507 = vmatpush1.msra.mxu0 0.0
    %508 = vmatprep.subr.mxu0 0.0
    %509 = vmatpush1.msra.mxu0 0.0
    %510 = vmatprep.subr.mxu0 0.0
    %511 = vmatpush1.msra.mxu0 0.0
    %512 = vmatprep.subr.mxu0 0.0
    %513 = vmatpush1.msra.mxu0 0.0
    %514 = vmatprep.subr.mxu0 0.0
    %515 = vmatpush1.msra.mxu0 0.0
    %516 = vmatprep.subr.mxu0 0.0
    %517 = vmatpush1.msra.mxu0 0.0
    %518 = vmatprep.subr.mxu0 0.0
    %519 = vmatpush1.msra.mxu0 0.0
    %520 = vmatprep.subr.mxu0 0.0
    %521 = vmatpush1.msra.mxu0 0.0
    %522 = vmatprep.subr.mxu0 0.0
    %523 = vmatpush1.msra.mxu0 0.0
    %524 = vmatprep.subr.mxu0 0.0
    %525 = vmatpush1.msra.mxu0 0.0
    %526 = vmatprep.subr.mxu0 0.0
    %527 = vmatpush1.msra.mxu0 0.0
    %528 = vmatprep.subr.mxu0 0.0
    %529 = vmatpush1.msra.mxu0 0.0
    %530 = vmatprep.mubr.f32.mxu0 0.0
    %v531 = vand.u32 %v89, 4294901760
    %532 = vmatmul.mubr.f32.gmra.mrb[0].mxu0 %v531
    %v533 = vpop.f32.mrb[0].mxu0
    %v534 = vadd.f32 %v462, %v533
    %v535 = vpop.f32.mrb[0].mxu0
    %536 = vdwg.mxu0
    %v537 = vld [vmem:[#allocation7] sm:$0xff]
    %v539 = vsel %vm87, %v537, 0
    %541 = vmatprep.subr.mxu0 0.0
    %v542 = vand.u32 %v85, 4294901760
    %543 = vmatpush1.msra.mxu0 %v542
    %544 = vmatprep.subr.mxu0 0.0
    %545 = vmatpush1.msra.mxu0 0.0
    %546 = vmatprep.subr.mxu0 0.0
    %547 = vmatpush1.msra.mxu0 0.0
    %548 = vmatprep.subr.mxu0 0.0
    %549 = vmatpush1.msra.mxu0 0.0
    %550 = vmatprep.subr.mxu0 0.0
    %551 = vmatpush1.msra.mxu0 0.0
    %552 = vmatprep.subr.mxu0 0.0
    %553 = vmatpush1.msra.mxu0 0.0
    %554 = vmatprep.subr.mxu0 0.0
    %555 = vmatpush1.msra.mxu0 0.0
    %556 = vmatprep.subr.mxu0 0.0
    %557 = vmatpush1.msra.mxu0 0.0
    %558 = vmatprep.subr.mxu0 0.0
    %559 = vmatpush1.msra.mxu0 0.0
    %560 = vmatprep.subr.mxu0 0.0
    %561 = vmatpush1.msra.mxu0 0.0
    %562 = vmatprep.subr.mxu0 0.0
    %563 = vmatpush1.msra.mxu0 0.0
    %564 = vmatprep.subr.mxu0 0.0
    %565 = vmatpush1.msra.mxu0 0.0
    %566 = vmatprep.subr.mxu0 0.0
    %567 = vmatpush1.msra.mxu0 0.0
    %568 = vmatprep.subr.mxu0 0.0
    %569 = vmatpush1.msra.mxu0 0.0
    %570 = vmatprep.subr.mxu0 0.0
    %571 = vmatpush1.msra.mxu0 0.0
    %572 = vmatprep.subr.mxu0 0.0
    %573 = vmatpush1.msra.mxu0 0.0
    %574 = vmatprep.subr.mxu0 0.0
    %575 = vmatpush1.msra.mxu0 0.0
    %576 = vmatprep.subr.mxu0 0.0
    %577 = vmatpush1.msra.mxu0 0.0
    %578 = vmatprep.subr.mxu0 0.0
    %579 = vmatpush1.msra.mxu0 0.0
    %580 = vmatprep.subr.mxu0 0.0
    %581 = vmatpush1.msra.mxu0 0.0
    %582 = vmatprep.subr.mxu0 0.0
    %583 = vmatpush1.msra.mxu0 0.0
    %584 = vmatprep.subr.mxu0 0.0
    %585 = vmatpush1.msra.mxu0 0.0
    %586 = vmatprep.subr.mxu0 0.0
    %587 = vmatpush1.msra.mxu0 0.0
    %588 = vmatprep.subr.mxu0 0.0
    %589 = vmatpush1.msra.mxu0 0.0
    %590 = vmatprep.subr.mxu0 0.0
    %591 = vmatpush1.msra.mxu0 0.0
    %592 = vmatprep.subr.mxu0 0.0
    %593 = vmatpush1.msra.mxu0 0.0
    %594 = vmatprep.subr.mxu0 0.0
    %595 = vmatpush1.msra.mxu0 0.0
    %596 = vmatprep.subr.mxu0 0.0
    %597 = vmatpush1.msra.mxu0 0.0
    %598 = vmatprep.subr.mxu0 0.0
    %599 = vmatpush1.msra.mxu0 0.0
    %600 = vmatprep.subr.mxu0 0.0
    %601 = vmatpush1.msra.mxu0 0.0
    %602 = vmatprep.subr.mxu0 0.0
    %603 = vmatpush1.msra.mxu0 0.0
    %604 = vmatprep.subr.mxu0 0.0
    %605 = vmatpush1.msra.mxu0 0.0
    %606 = vmatprep.mubr.f32.mxu0 0.0
    %v607 = vand.u32 %v539, 4294901760
    %v608 = vsub.f32 %v539, %v607
    %v609 = vand.u32 %v608, 4294901760
    %v610 = vsub.f32 %v608, %v609
    %v611 = vand.u32 %v610, 4294901760
    %612 = vmatmul.mubr.f32.gmra.mrb[0].mxu0 %v611
    %v613 = vpop.f32.mrb[0].mxu0
    %v614 = vadd.f32 0.0, %v613
    %v615 = vpop.f32.mrb[0].mxu0
    %616 = vdwg.mxu0
    %617 = vmatprep.subr.mxu0 0.0
    %v618 = vand.u32 %v85, 4294901760
    %v619 = vsub.f32 %v85, %v618
    %v620 = vand.u32 %v619, 4294901760
    %v621 = vsub.f32 %v619, %v620
    %v622 = vand.u32 %v621, 4294901760
    %623 = vmatpush1.msra.mxu0 %v622
    %624 = vmatprep.subr.mxu0 0.0
    %625 = vmatpush1.msra.mxu0 0.0
    %626 = vmatprep.subr.mxu0 0.0
    %627 = vmatpush1.msra.mxu0 0.0
    %628 = vmatprep.subr.mxu0 0.0
    %629 = vmatpush1.msra.mxu0 0.0
    %630 = vmatprep.subr.mxu0 0.0
    %631 = vmatpush1.msra.mxu0 0.0
    %632 = vmatprep.subr.mxu0 0.0
    %633 = vmatpush1.msra.mxu0 0.0
    %634 = vmatprep.subr.mxu0 0.0
    %635 = vmatpush1.msra.mxu0 0.0
    %636 = vmatprep.subr.mxu0 0.0
    %637 = vmatpush1.msra.mxu0 0.0
    %638 = vmatprep.subr.mxu0 0.0
    %639 = vmatpush1.msra.mxu0 0.0
    %640 = vmatprep.subr.mxu0 0.0
    %641 = vmatpush1.msra.mxu0 0.0
    %642 = vmatprep.subr.mxu0 0.0
    %643 = vmatpush1.msra.mxu0 0.0
    %644 = vmatprep.subr.mxu0 0.0
    %645 = vmatpush1.msra.mxu0 0.0
    %646 = vmatprep.subr.mxu0 0.0
    %647 = vmatpush1.msra.mxu0 0.0
    %648 = vmatprep.subr.mxu0 0.0
    %649 = vmatpush1.msra.mxu0 0.0
    %650 = vmatprep.subr.mxu0 0.0
    %651 = vmatpush1.msra.mxu0 0.0
    %652 = vmatprep.subr.mxu0 0.0
    %653 = vmatpush1.msra.mxu0 0.0
    %654 = vmatprep.subr.mxu0 0.0
    %655 = vmatpush1.msra.mxu0 0.0
    %656 = vmatprep.subr.mxu0 0.0
    %657 = vmatpush1.msra.mxu0 0.0
    %658 = vmatprep.subr.mxu0 0.0
    %659 = vmatpush1.msra.mxu0 0.0
    %660 = vmatprep.subr.mxu0 0.0
    %661 = vmatpush1.msra.mxu0 0.0
    %662 = vmatprep.subr.mxu0 0.0
    %663 = vmatpush1.msra.mxu0 0.0
    %664 = vmatprep.subr.mxu0 0.0
    %665 = vmatpush1.msra.mxu0 0.0
    %666 = vmatprep.subr.mxu0 0.0
    %667 = vmatpush1.msra.mxu0 0.0
    %668 = vmatprep.subr.mxu0 0.0
    %669 = vmatpush1.msra.mxu0 0.0
    %670 = vmatprep.subr.mxu0 0.0
    %671 = vmatpush1.msra.mxu0 0.0
    %672 = vmatprep.subr.mxu0 0.0
    %673 = vmatpush1.msra.mxu0 0.0
    %674 = vmatprep.subr.mxu0 0.0
    %675 = vmatpush1.msra.mxu0 0.0
    %676 = vmatprep.subr.mxu0 0.0
    %677 = vmatpush1.msra.mxu0 0.0
    %678 = vmatprep.subr.mxu0 0.0
    %679 = vmatpush1.msra.mxu0 0.0
    %680 = vmatprep.subr.mxu0 0.0
    %681 = vmatpush1.msra.mxu0 0.0
    %682 = vmatprep.subr.mxu0 0.0
    %683 = vmatpush1.msra.mxu0 0.0
    %684 = vmatprep.subr.mxu0 0.0
    %685 = vmatpush1.msra.mxu0 0.0
    %686 = vmatprep.mubr.f32.mxu0 0.0
    %v687 = vand.u32 %v539, 4294901760
    %688 = vmatmul.mubr.f32.gmra.mrb[0].mxu0 %v687
    %v689 = vpop.f32.mrb[0].mxu0
    %v690 = vadd.f32 %v614, %v689
    %v691 = vpop.f32.mrb[0].mxu0
    %692 = vdwg.mxu0
    %693 = vmatprep.subr.mxu0 0.0
    %v694 = vand.u32 %v85, 4294901760
    %v695 = vsub.f32 %v85, %v694
    %696 = vmatpush1.msra.mxu0 %v695
    %697 = vmatprep.subr.mxu0 0.0
    %698 = vmatpush1.msra.mxu0 0.0
    %699 = vmatprep.subr.mxu0 0.0
    %700 = vmatpush1.msra.mxu0 0.0
    %701 = vmatprep.subr.mxu0 0.0
    %702 = vmatpush1.msra.mxu0 0.0
    %703 = vmatprep.subr.mxu0 0.0
    %704 = vmatpush1.msra.mxu0 0.0
    %705 = vmatprep.subr.mxu0 0.0
    %706 = vmatpush1.msra.mxu0 0.0
    %707 = vmatprep.subr.mxu0 0.0
    %708 = vmatpush1.msra.mxu0 0.0
    %709 = vmatprep.subr.mxu0 0.0
    %710 = vmatpush1.msra.mxu0 0.0
    %711 = vmatprep.subr.mxu0 0.0
    %712 = vmatpush1.msra.mxu0 0.0
    %713 = vmatprep.subr.mxu0 0.0
    %714 = vmatpush1.msra.mxu0 0.0
    %715 = vmatprep.subr.mxu0 0.0
    %716 = vmatpush1.msra.mxu0 0.0
    %717 = vmatprep.subr.mxu0 0.0
    %718 = vmatpush1.msra.mxu0 0.0
    %719 = vmatprep.subr.mxu0 0.0
    %720 = vmatpush1.msra.mxu0 0.0
    %721 = vmatprep.subr.mxu0 0.0
    %722 = vmatpush1.msra.mxu0 0.0
    %723 = vmatprep.subr.mxu0 0.0
    %724 = vmatpush1.msra.mxu0 0.0
    %725 = vmatprep.subr.mxu0 0.0
    %726 = vmatpush1.msra.mxu0 0.0
    %727 = vmatprep.subr.mxu0 0.0
    %728 = vmatpush1.msra.mxu0 0.0
    %729 = vmatprep.subr.mxu0 0.0
    %730 = vmatpush1.msra.mxu0 0.0
    %731 = vmatprep.subr.mxu0 0.0
    %732 = vmatpush1.msra.mxu0 0.0
    %733 = vmatprep.subr.mxu0 0.0
    %734 = vmatpush1.msra.mxu0 0.0
    %735 = vmatprep.subr.mxu0 0.0
    %736 = vmatpush1.msra.mxu0 0.0
    %737 = vmatprep.subr.mxu0 0.0
    %738 = vmatpush1.msra.mxu0 0.0
    %739 = vmatprep.subr.mxu0 0.0
    %740 = vmatpush1.msra.mxu0 0.0
    %741 = vmatprep.subr.mxu0 0.0
    %742 = vmatpush1.msra.mxu0 0.0
    %743 = vmatprep.subr.mxu0 0.0
    %744 = vmatpush1.msra.mxu0 0.0
    %745 = vmatprep.subr.mxu0 0.0
    %746 = vmatpush1.msra.mxu0 0.0
    %747 = vmatprep.subr.mxu0 0.0
    %748 = vmatpush1.msra.mxu0 0.0
    %749 = vmatprep.subr.mxu0 0.0
    %750 = vmatpush1.msra.mxu0 0.0
    %751 = vmatprep.subr.mxu0 0.0
    %752 = vmatpush1.msra.mxu0 0.0
    %753 = vmatprep.subr.mxu0 0.0
    %754 = vmatpush1.msra.mxu0 0.0
    %755 = vmatprep.subr.mxu0 0.0
    %756 = vmatpush1.msra.mxu0 0.0
    %757 = vmatprep.subr.mxu0 0.0
    %758 = vmatpush1.msra.mxu0 0.0
    %759 = vmatprep.mubr.f32.mxu0 0.0
    %v760 = vand.u32 %v539, 4294901760
    %v761 = vsub.f32 %v539, %v760
    %762 = vmatmul.mubr.f32.gmra.mrb[0].mxu0 %v761
    %v763 = vpop.f32.mrb[0].mxu0
    %v764 = vadd.f32 %v690, %v763
    %v765 = vpop.f32.mrb[0].mxu0
    %766 = vdwg.mxu0
    %767 = vmatprep.subr.mxu0 0.0
    %v768 = vand.u32 %v85, 4294901760
    %769 = vmatpush1.msra.mxu0 %v768
    %770 = vmatprep.subr.mxu0 0.0
    %771 = vmatpush1.msra.mxu0 0.0
    %772 = vmatprep.subr.mxu0 0.0
    %773 = vmatpush1.msra.mxu0 0.0
    %774 = vmatprep.subr.mxu0 0.0
    %775 = vmatpush1.msra.mxu0 0.0
    %776 = vmatprep.subr.mxu0 0.0
    %777 = vmatpush1.msra.mxu0 0.0
    %778 = vmatprep.subr.mxu0 0.0
    %779 = vmatpush1.msra.mxu0 0.0
    %780 = vmatprep.subr.mxu0 0.0
    %781 = vmatpush1.msra.mxu0 0.0
    %782 = vmatprep.subr.mxu0 0.0
    %783 = vmatpush1.msra.mxu0 0.0
    %784 = vmatprep.subr.mxu0 0.0
    %785 = vmatpush1.msra.mxu0 0.0
    %786 = vmatprep.subr.mxu0 0.0
    %787 = vmatpush1.msra.mxu0 0.0
    %788 = vmatprep.subr.mxu0 0.0
    %789 = vmatpush1.msra.mxu0 0.0
    %790 = vmatprep.subr.mxu0 0.0
    %791 = vmatpush1.msra.mxu0 0.0
    %792 = vmatprep.subr.mxu0 0.0
    %793 = vmatpush1.msra.mxu0 0.0
    %794 = vmatprep.subr.mxu0 0.0
    %795 = vmatpush1.msra.mxu0 0.0
    %796 = vmatprep.subr.mxu0 0.0
    %797 = vmatpush1.msra.mxu0 0.0
    %798 = vmatprep.subr.mxu0 0.0
    %799 = vmatpush1.msra.mxu0 0.0
    %800 = vmatprep.subr.mxu0 0.0
    %801 = vmatpush1.msra.mxu0 0.0
    %802 = vmatprep.subr.mxu0 0.0
    %803 = vmatpush1.msra.mxu0 0.0
    %804 = vmatprep.subr.mxu0 0.0
    %805 = vmatpush1.msra.mxu0 0.0
    %806 = vmatprep.subr.mxu0 0.0
    %807 = vmatpush1.msra.mxu0 0.0
    %808 = vmatprep.subr.mxu0 0.0
    %809 = vmatpush1.msra.mxu0 0.0
    %810 = vmatprep.subr.mxu0 0.0
    %811 = vmatpush1.msra.mxu0 0.0
    %812 = vmatprep.subr.mxu0 0.0
    %813 = vmatpush1.msra.mxu0 0.0
    %814 = vmatprep.subr.mxu0 0.0
    %815 = vmatpush1.msra.mxu0 0.0
    %816 = vmatprep.subr.mxu0 0.0
    %817 = vmatpush1.msra.mxu0 0.0
    %818 = vmatprep.subr.mxu0 0.0
    %819 = vmatpush1.msra.mxu0 0.0
    %820 = vmatprep.subr.mxu0 0.0
    %821 = vmatpush1.msra.mxu0 0.0
    %822 = vmatprep.subr.mxu0 0.0
    %823 = vmatpush1.msra.mxu0 0.0
    %824 = vmatprep.subr.mxu0 0.0
    %825 = vmatpush1.msra.mxu0 0.0
    %826 = vmatprep.subr.mxu0 0.0
    %827 = vmatpush1.msra.mxu0 0.0
    %828 = vmatprep.subr.mxu0 0.0
    %829 = vmatpush1.msra.mxu0 0.0
    %830 = vmatprep.subr.mxu0 0.0
    %831 = vmatpush1.msra.mxu0 0.0
    %832 = vmatprep.mubr.f32.mxu0 0.0
    %v833 = vand.u32 %v539, 4294901760
    %v834 = vsub.f32 %v539, %v833
    %v835 = vand.u32 %v834, 4294901760
    %836 = vmatmul.mubr.f32.gmra.mrb[0].mxu0 %v835
    %v837 = vpop.f32.mrb[0].mxu0
    %v838 = vadd.f32 %v764, %v837
    %v839 = vpop.f32.mrb[0].mxu0
    %840 = vdwg.mxu0
    %841 = vmatprep.subr.mxu0 0.0
    %v842 = vand.u32 %v85, 4294901760
    %v843 = vsub.f32 %v85, %v842
    %v844 = vand.u32 %v843, 4294901760
    %845 = vmatpush1.msra.mxu0 %v844
    %846 = vmatprep.subr.mxu0 0.0
    %847 = vmatpush1.msra.mxu0 0.0
    %848 = vmatprep.subr.mxu0 0.0
    %849 = vmatpush1.msra.mxu0 0.0
    %850 = vmatprep.subr.mxu0 0.0
    %851 = vmatpush1.msra.mxu0 0.0
    %852 = vmatprep.subr.mxu0 0.0
    %853 = vmatpush1.msra.mxu0 0.0
    %854 = vmatprep.subr.mxu0 0.0
    %855 = vmatpush1.msra.mxu0 0.0
    %856 = vmatprep.subr.mxu0 0.0
    %857 = vmatpush1.msra.mxu0 0.0
    %858 = vmatprep.subr.mxu0 0.0
    %859 = vmatpush1.msra.mxu0 0.0
    %860 = vmatprep.subr.mxu0 0.0
    %861 = vmatpush1.msra.mxu0 0.0
    %862 = vmatprep.subr.mxu0 0.0
    %863 = vmatpush1.msra.mxu0 0.0
    %864 = vmatprep.subr.mxu0 0.0
    %865 = vmatpush1.msra.mxu0 0.0
    %866 = vmatprep.subr.mxu0 0.0
    %867 = vmatpush1.msra.mxu0 0.0
    %868 = vmatprep.subr.mxu0 0.0
    %869 = vmatpush1.msra.mxu0 0.0
    %870 = vmatprep.subr.mxu0 0.0
    %871 = vmatpush1.msra.mxu0 0.0
    %872 = vmatprep.subr.mxu0 0.0
    %873 = vmatpush1.msra.mxu0 0.0
    %874 = vmatprep.subr.mxu0 0.0
    %875 = vmatpush1.msra.mxu0 0.0
    %876 = vmatprep.subr.mxu0 0.0
    %877 = vmatpush1.msra.mxu0 0.0
    %878 = vmatprep.subr.mxu0 0.0
    %879 = vmatpush1.msra.mxu0 0.0
    %880 = vmatprep.subr.mxu0 0.0
    %881 = vmatpush1.msra.mxu0 0.0
    %882 = vmatprep.subr.mxu0 0.0
    %883 = vmatpush1.msra.mxu0 0.0
    %884 = vmatprep.subr.mxu0 0.0
    %885 = vmatpush1.msra.mxu0 0.0
    %886 = vmatprep.subr.mxu0 0.0
    %887 = vmatpush1.msra.mxu0 0.0
    %888 = vmatprep.subr.mxu0 0.0
    %889 = vmatpush1.msra.mxu0 0.0
    %890 = vmatprep.subr.mxu0 0.0
    %891 = vmatpush1.msra.mxu0 0.0
    %892 = vmatprep.subr.mxu0 0.0
    %893 = vmatpush1.msra.mxu0 0.0
    %894 = vmatprep.subr.mxu0 0.0
    %895 = vmatpush1.msra.mxu0 0.0
    %896 = vmatprep.subr.mxu0 0.0
    %897 = vmatpush1.msra.mxu0 0.0
    %898 = vmatprep.subr.mxu0 0.0
    %899 = vmatpush1.msra.mxu0 0.0
    %900 = vmatprep.subr.mxu0 0.0
    %901 = vmatpush1.msra.mxu0 0.0
    %902 = vmatprep.subr.mxu0 0.0
    %903 = vmatpush1.msra.mxu0 0.0
    %904 = vmatprep.subr.mxu0 0.0
    %905 = vmatpush1.msra.mxu0 0.0
    %906 = vmatprep.subr.mxu0 0.0
    %907 = vmatpush1.msra.mxu0 0.0
    %908 = vmatprep.mubr.f32.mxu0 0.0
    %v909 = vand.u32 %v539, 4294901760
    %910 = vmatmul.mubr.f32.gmra.mrb[0].mxu0 %v909
    %v911 = vpop.f32.mrb[0].mxu0
    %v912 = vadd.f32 %v838, %v911
    %v913 = vpop.f32.mrb[0].mxu0
    %914 = vdwg.mxu0
    %915 = vmatprep.subr.mxu0 0.0
    %v916 = vand.u32 %v85, 4294901760
    %917 = vmatpush1.msra.mxu0 %v916
    %918 = vmatprep.subr.mxu0 0.0
    %919 = vmatpush1.msra.mxu0 0.0
    %920 = vmatprep.subr.mxu0 0.0
    %921 = vmatpush1.msra.mxu0 0.0
    %922 = vmatprep.subr.mxu0 0.0
    %923 = vmatpush1.msra.mxu0 0.0
    %924 = vmatprep.subr.mxu0 0.0
    %925 = vmatpush1.msra.mxu0 0.0
    %926 = vmatprep.subr.mxu0 0.0
    %927 = vmatpush1.msra.mxu0 0.0
    %928 = vmatprep.subr.mxu0 0.0
    %929 = vmatpush1.msra.mxu0 0.0
    %930 = vmatprep.subr.mxu0 0.0
    %931 = vmatpush1.msra.mxu0 0.0
    %932 = vmatprep.subr.mxu0 0.0
    %933 = vmatpush1.msra.mxu0 0.0
    %934 = vmatprep.subr.mxu0 0.0
    %935 = vmatpush1.msra.mxu0 0.0
    %936 = vmatprep.subr.mxu0 0.0
    %937 = vmatpush1.msra.mxu0 0.0
    %938 = vmatprep.subr.mxu0 0.0
    %939 = vmatpush1.msra.mxu0 0.0
    %940 = vmatprep.subr.mxu0 0.0
    %941 = vmatpush1.msra.mxu0 0.0
    %942 = vmatprep.subr.mxu0 0.0
    %943 = vmatpush1.msra.mxu0 0.0
    %944 = vmatprep.subr.mxu0 0.0
    %945 = vmatpush1.msra.mxu0 0.0
    %946 = vmatprep.subr.mxu0 0.0
    %947 = vmatpush1.msra.mxu0 0.0
    %948 = vmatprep.subr.mxu0 0.0
    %949 = vmatpush1.msra.mxu0 0.0
    %950 = vmatprep.subr.mxu0 0.0
    %951 = vmatpush1.msra.mxu0 0.0
    %952 = vmatprep.subr.mxu0 0.0
    %953 = vmatpush1.msra.mxu0 0.0
    %954 = vmatprep.subr.mxu0 0.0
    %955 = vmatpush1.msra.mxu0 0.0
    %956 = vmatprep.subr.mxu0 0.0
    %957 = vmatpush1.msra.mxu0 0.0
    %958 = vmatprep.subr.mxu0 0.0
    %959 = vmatpush1.msra.mxu0 0.0
    %960 = vmatprep.subr.mxu0 0.0
    %961 = vmatpush1.msra.mxu0 0.0
    %962 = vmatprep.subr.mxu0 0.0
    %963 = vmatpush1.msra.mxu0 0.0
    %964 = vmatprep.subr.mxu0 0.0
    %965 = vmatpush1.msra.mxu0 0.0
    %966 = vmatprep.subr.mxu0 0.0
    %967 = vmatpush1.msra.mxu0 0.0
    %968 = vmatprep.subr.mxu0 0.0
    %969 = vmatpush1.msra.mxu0 0.0
    %970 = vmatprep.subr.mxu0 0.0
    %971 = vmatpush1.msra.mxu0 0.0
    %972 = vmatprep.subr.mxu0 0.0
    %973 = vmatpush1.msra.mxu0 0.0
    %974 = vmatprep.subr.mxu0 0.0
    %975 = vmatpush1.msra.mxu0 0.0
    %976 = vmatprep.subr.mxu0 0.0
    %977 = vmatpush1.msra.mxu0 0.0
    %978 = vmatprep.subr.mxu0 0.0
    %979 = vmatpush1.msra.mxu0 0.0
    %980 = vmatprep.mubr.f32.mxu0 0.0
    %v981 = vand.u32 %v539, 4294901760
    %982 = vmatmul.mubr.f32.gmra.mrb[0].mxu0 %v981
    %v983 = vpop.f32.mrb[0].mxu0
    %v984 = vadd.f32 %v912, %v983
    %v985 = vpop.f32.mrb[0].mxu0
    %986 = vdwg.mxu0
    %v987 = vld [vmem:[%s5] sm:$0xff]
    %v988 = vld [vmem:[#allocation10] sm:$0xff]
    %v989 = vmul.f32 %v534, %v987
    %v990 = vmul.f32 %v984, %v988
    %v991 = vsub.f32 %v989, %v990
    %v992 = vmul.f32 %v534, %v988
    %v993 = vmul.f32 %v984, %v987
    %v994 = vadd.f32 %v992, %v993
    %v995 = vld [vmem:[%s3] sm:$0xff]
    %v996 = vld [vmem:[#allocation8] sm:$0xff]
    %v998 = vsel %vm87, %v996, 0
    %1000 = vmatprep.subr.mxu0 0.0
    %v1001 = vand.u32 %v994, 4294901760
    %1002 = vmatpush1.msra.mxu0 %v1001
    %1003 = vmatprep.subr.mxu0 0.0
    %1004 = vmatpush1.msra.mxu0 0.0
    %1005 = vmatprep.subr.mxu0 0.0
    %1006 = vmatpush1.msra.mxu0 0.0
    %1007 = vmatprep.subr.mxu0 0.0
    %1008 = vmatpush1.msra.mxu0 0.0
    %1009 = vmatprep.subr.mxu0 0.0
    %1010 = vmatpush1.msra.mxu0 0.0
    %1011 = vmatprep.subr.mxu0 0.0
    %1012 = vmatpush1.msra.mxu0 0.0
    %1013 = vmatprep.subr.mxu0 0.0
    %1014 = vmatpush1.msra.mxu0 0.0
    %1015 = vmatprep.subr.mxu0 0.0
    %1016 = vmatpush1.msra.mxu0 0.0
    %1017 = vmatprep.subr.mxu0 0.0
    %1018 = vmatpush1.msra.mxu0 0.0
    %1019 = vmatprep.subr.mxu0 0.0
    %1020 = vmatpush1.msra.mxu0 0.0
    %1021 = vmatprep.subr.mxu0 0.0
    %1022 = vmatpush1.msra.mxu0 0.0
    %1023 = vmatprep.subr.mxu0 0.0
    %1024 = vmatpush1.msra.mxu0 0.0
    %1025 = vmatprep.subr.mxu0 0.0
    %1026 = vmatpush1.msra.mxu0 0.0
    %1027 = vmatprep.subr.mxu0 0.0
    %1028 = vmatpush1.msra.mxu0 0.0
    %1029 = vmatprep.subr.mxu0 0.0
    %1030 = vmatpush1.msra.mxu0 0.0
    %1031 = vmatprep.subr.mxu0 0.0
    %1032 = vmatpush1.msra.mxu0 0.0
    %1033 = vmatprep.subr.mxu0 0.0
    %1034 = vmatpush1.msra.mxu0 0.0
    %1035 = vmatprep.subr.mxu0 0.0
    %1036 = vmatpush1.msra.mxu0 0.0
    %1037 = vmatprep.subr.mxu0 0.0
    %1038 = vmatpush1.msra.mxu0 0.0
    %1039 = vmatprep.subr.mxu0 0.0
    %1040 = vmatpush1.msra.mxu0 0.0
    %1041 = vmatprep.subr.mxu0 0.0
    %1042 = vmatpush1.msra.mxu0 0.0
    %1043 = vmatprep.subr.mxu0 0.0
    %1044 = vmatpush1.msra.mxu0 0.0
    %1045 = vmatprep.subr.mxu0 0.0
    %1046 = vmatpush1.msra.mxu0 0.0
    %1047 = vmatprep.subr.mxu0 0.0
    %1048 = vmatpush1.msra.mxu0 0.0
    %1049 = vmatprep.subr.mxu0 0.0
    %1050 = vmatpush1.msra.mxu0 0.0
    %1051 = vmatprep.subr.mxu0 0.0
    %1052 = vmatpush1.msra.mxu0 0.0
    %1053 = vmatprep.subr.mxu0 0.0
    %1054 = vmatpush1.msra.mxu0 0.0
    %1055 = vmatprep.subr.mxu0 0.0
    %1056 = vmatpush1.msra.mxu0 0.0
    %1057 = vmatprep.subr.mxu0 0.0
    %1058 = vmatpush1.msra.mxu0 0.0
    %1059 = vmatprep.subr.mxu0 0.0
    %1060 = vmatpush1.msra.mxu0 0.0
    %1061 = vmatprep.subr.mxu0 0.0
    %1062 = vmatpush1.msra.mxu0 0.0
    %1063 = vmatprep.subr.mxu0 0.0
    %1064 = vmatpush1.msra.mxu0 0.0
    %1065 = vmatprep.mubr.f32.mxu0 0.0
    %v1066 = vand.u32 %v998, 4294901760
    %v1067 = vsub.f32 %v998, %v1066
    %v1068 = vand.u32 %v1067, 4294901760
    %v1069 = vsub.f32 %v1067, %v1068
    %v1070 = vand.u32 %v1069, 4294901760
    %1071 = vmatmul.mubr.f32.gmra.mrb[0].mxu0 %v1070
    %v1072 = vpop.f32.mrb[0].mxu0
    %v1073 = vadd.f32 0.0, %v1072
    %v1074 = vpop.f32.mrb[0].mxu0
    %1075 = vdwg.mxu0
    %1076 = vmatprep.subr.mxu0 0.0
    %v1077 = vand.u32 %v994, 4294901760
    %v1078 = vsub.f32 %v994, %v1077
    %v1079 = vand.u32 %v1078, 4294901760
    %v1080 = vsub.f32 %v1078, %v1079
    %v1081 = vand.u32 %v1080, 4294901760
    %1082 = vmatpush1.msra.mxu0 %v1081
    %1083 = vmatprep.subr.mxu0 0.0
    %1084 = vmatpush1.msra.mxu0 0.0
    %1085 = vmatprep.subr.mxu0 0.0
    %1086 = vmatpush1.msra.mxu0 0.0
    %1087 = vmatprep.subr.mxu0 0.0
    %1088 = vmatpush1.msra.mxu0 0.0
    %1089 = vmatprep.subr.mxu0 0.0
    %1090 = vmatpush1.msra.mxu0 0.0
    %1091 = vmatprep.subr.mxu0 0.0
    %1092 = vmatpush1.msra.mxu0 0.0
    %1093 = vmatprep.subr.mxu0 0.0
    %1094 = vmatpush1.msra.mxu0 0.0
    %1095 = vmatprep.subr.mxu0 0.0
    %1096 = vmatpush1.msra.mxu0 0.0
    %1097 = vmatprep.subr.mxu0 0.0
    %1098 = vmatpush1.msra.mxu0 0.0
    %1099 = vmatprep.subr.mxu0 0.0
    %1100 = vmatpush1.msra.mxu0 0.0
    %1101 = vmatprep.subr.mxu0 0.0
    %1102 = vmatpush1.msra.mxu0 0.0
    %1103 = vmatprep.subr.mxu0 0.0
    %1104 = vmatpush1.msra.mxu0 0.0
    %1105 = vmatprep.subr.mxu0 0.0
    %1106 = vmatpush1.msra.mxu0 0.0
    %1107 = vmatprep.subr.mxu0 0.0
    %1108 = vmatpush1.msra.mxu0 0.0
    %1109 = vmatprep.subr.mxu0 0.0
    %1110 = vmatpush1.msra.mxu0 0.0
    %1111 = vmatprep.subr.mxu0 0.0
    %1112 = vmatpush1.msra.mxu0 0.0
    %1113 = vmatprep.subr.mxu0 0.0
    %1114 = vmatpush1.msra.mxu0 0.0
    %1115 = vmatprep.subr.mxu0 0.0
    %1116 = vmatpush1.msra.mxu0 0.0
    %1117 = vmatprep.subr.mxu0 0.0
    %1118 = vmatpush1.msra.mxu0 0.0
    %1119 = vmatprep.subr.mxu0 0.0
    %1120 = vmatpush1.msra.mxu0 0.0
    %1121 = vmatprep.subr.mxu0 0.0
    %1122 = vmatpush1.msra.mxu0 0.0
    %1123 = vmatprep.subr.mxu0 0.0
    %1124 = vmatpush1.msra.mxu0 0.0
    %1125 = vmatprep.subr.mxu0 0.0
    %1126 = vmatpush1.msra.mxu0 0.0
    %1127 = vmatprep.subr.mxu0 0.0
    %1128 = vmatpush1.msra.mxu0 0.0
    %1129 = vmatprep.subr.mxu0 0.0
    %1130 = vmatpush1.msra.mxu0 0.0
    %1131 = vmatprep.subr.mxu0 0.0
    %1132 = vmatpush1.msra.mxu0 0.0
    %1133 = vmatprep.subr.mxu0 0.0
    %1134 = vmatpush1.msra.mxu0 0.0
    %1135 = vmatprep.subr.mxu0 0.0
    %1136 = vmatpush1.msra.mxu0 0.0
    %1137 = vmatprep.subr.mxu0 0.0
    %1138 = vmatpush1.msra.mxu0 0.0
    %1139 = vmatprep.subr.mxu0 0.0
    %1140 = vmatpush1.msra.mxu0 0.0
    %1141 = vmatprep.subr.mxu0 0.0
    %1142 = vmatpush1.msra.mxu0 0.0
    %1143 = vmatprep.subr.mxu0 0.0
    %1144 = vmatpush1.msra.mxu0 0.0
    %1145 = vmatprep.mubr.f32.mxu0 0.0
    %v1146 = vand.u32 %v998, 4294901760
    %1147 = vmatmul.mubr.f32.gmra.mrb[0].mxu0 %v1146
    %v1148 = vpop.f32.mrb[0].mxu0
    %v1149 = vadd.f32 %v1073, %v1148
    %v1150 = vpop.f32.mrb[0].mxu0
    %1151 = vdwg.mxu0
    %1152 = vmatprep.subr.mxu0 0.0
    %v1153 = vand.u32 %v994, 4294901760
    %v1154 = vsub.f32 %v994, %v1153
    %1155 = vmatpush1.msra.mxu0 %v1154
    %1156 = vmatprep.subr.mxu0 0.0
    %1157 = vmatpush1.msra.mxu0 0.0
    %1158 = vmatprep.subr.mxu0 0.0
    %1159 = vmatpush1.msra.mxu0 0.0
    %1160 = vmatprep.subr.mxu0 0.0
    %1161 = vmatpush1.msra.mxu0 0.0
    %1162 = vmatprep.subr.mxu0 0.0
    %1163 = vmatpush1.msra.mxu0 0.0
    %1164 = vmatprep.subr.mxu0 0.0
    %1165 = vmatpush1.msra.mxu0 0.0
    %1166 = vmatprep.subr.mxu0 0.0
    %1167 = vmatpush1.msra.mxu0 0.0
    %1168 = vmatprep.subr.mxu0 0.0
    %1169 = vmatpush1.msra.mxu0 0.0
    %1170 = vmatprep.subr.mxu0 0.0
    %1171 = vmatpush1.msra.mxu0 0.0
    %1172 = vmatprep.subr.mxu0 0.0
    %1173 = vmatpush1.msra.mxu0 0.0
    %1174 = vmatprep.subr.mxu0 0.0
    %1175 = vmatpush1.msra.mxu0 0.0
    %1176 = vmatprep.subr.mxu0 0.0
    %1177 = vmatpush1.msra.mxu0 0.0
    %1178 = vmatprep.subr.mxu0 0.0
    %1179 = vmatpush1.msra.mxu0 0.0
    %1180 = vmatprep.subr.mxu0 0.0
    %1181 = vmatpush1.msra.mxu0 0.0
    %1182 = vmatprep.subr.mxu0 0.0
    %1183 = vmatpush1.msra.mxu0 0.0
    %1184 = vmatprep.subr.mxu0 0.0
    %1185 = vmatpush1.msra.mxu0 0.0
    %1186 = vmatprep.subr.mxu0 0.0
    %1187 = vmatpush1.msra.mxu0 0.0
    %1188 = vmatprep.subr.mxu0 0.0
    %1189 = vmatpush1.msra.mxu0 0.0
    %1190 = vmatprep.subr.mxu0 0.0
    %1191 = vmatpush1.msra.mxu0 0.0
    %1192 = vmatprep.subr.mxu0 0.0
    %1193 = vmatpush1.msra.mxu0 0.0
    %1194 = vmatprep.subr.mxu0 0.0
    %1195 = vmatpush1.msra.mxu0 0.0
    %1196 = vmatprep.subr.mxu0 0.0
    %1197 = vmatpush1.msra.mxu0 0.0
    %1198 = vmatprep.subr.mxu0 0.0
    %1199 = vmatpush1.msra.mxu0 0.0
    %1200 = vmatprep.subr.mxu0 0.0
    %1201 = vmatpush1.msra.mxu0 0.0
    %1202 = vmatprep.subr.mxu0 0.0
    %1203 = vmatpush1.msra.mxu0 0.0
    %1204 = vmatprep.subr.mxu0 0.0
    %1205 = vmatpush1.msra.mxu0 0.0
    %1206 = vmatprep.subr.mxu0 0.0
    %1207 = vmatpush1.msra.mxu0 0.0
    %1208 = vmatprep.subr.mxu0 0.0
    %1209 = vmatpush1.msra.mxu0 0.0
    %1210 = vmatprep.subr.mxu0 0.0
    %1211 = vmatpush1.msra.mxu0 0.0
    %1212 = vmatprep.subr.mxu0 0.0
    %1213 = vmatpush1.msra.mxu0 0.0
    %1214 = vmatprep.subr.mxu0 0.0
    %1215 = vmatpush1.msra.mxu0 0.0
    %1216 = vmatprep.subr.mxu0 0.0
    %1217 = vmatpush1.msra.mxu0 0.0
    %1218 = vmatprep.mubr.f32.mxu0 0.0
    %v1219 = vand.u32 %v998, 4294901760
    %v1220 = vsub.f32 %v998, %v1219
    %1221 = vmatmul.mubr.f32.gmra.mrb[0].mxu0 %v1220
    %v1222 = vpop.f32.mrb[0].mxu0
    %v1223 = vadd.f32 %v1149, %v1222
    %v1224 = vpop.f32.mrb[0].mxu0
    %1225 = vdwg.mxu0
    %1226 = vmatprep.subr.mxu0 0.0
    %v1227 = vand.u32 %v994, 4294901760
    %1228 = vmatpush1.msra.mxu0 %v1227
    %1229 = vmatprep.subr.mxu0 0.0
    %1230 = vmatpush1.msra.mxu0 0.0
    %1231 = vmatprep.subr.mxu0 0.0
    %1232 = vmatpush1.msra.mxu0 0.0
    %1233 = vmatprep.subr.mxu0 0.0
    %1234 = vmatpush1.msra.mxu0 0.0
    %1235 = vmatprep.subr.mxu0 0.0
    %1236 = vmatpush1.msra.mxu0 0.0
    %1237 = vmatprep.subr.mxu0 0.0
    %1238 = vmatpush1.msra.mxu0 0.0
    %1239 = vmatprep.subr.mxu0 0.0
    %1240 = vmatpush1.msra.mxu0 0.0
    %1241 = vmatprep.subr.mxu0 0.0
    %1242 = vmatpush1.msra.mxu0 0.0
    %1243 = vmatprep.subr.mxu0 0.0
    %1244 = vmatpush1.msra.mxu0 0.0
    %1245 = vmatprep.subr.mxu0 0.0
    %1246 = vmatpush1.msra.mxu0 0.0
    %1247 = vmatprep.subr.mxu0 0.0
    %1248 = vmatpush1.msra.mxu0 0.0
    %1249 = vmatprep.subr.mxu0 0.0
    %1250 = vmatpush1.msra.mxu0 0.0
    %1251 = vmatprep.subr.mxu0 0.0
    %1252 = vmatpush1.msra.mxu0 0.0
    %1253 = vmatprep.subr.mxu0 0.0
    %1254 = vmatpush1.msra.mxu0 0.0
    %1255 = vmatprep.subr.mxu0 0.0
    %1256 = vmatpush1.msra.mxu0 0.0
    %1257 = vmatprep.subr.mxu0 0.0
    %1258 = vmatpush1.msra.mxu0 0.0
    %1259 = vmatprep.subr.mxu0 0.0
    %1260 = vmatpush1.msra.mxu0 0.0
    %1261 = vmatprep.subr.mxu0 0.0
    %1262 = vmatpush1.msra.mxu0 0.0
    %1263 = vmatprep.subr.mxu0 0.0
    %1264 = vmatpush1.msra.mxu0 0.0
    %1265 = vmatprep.subr.mxu0 0.0
    %1266 = vmatpush1.msra.mxu0 0.0
    %1267 = vmatprep.subr.mxu0 0.0
    %1268 = vmatpush1.msra.mxu0 0.0
    %1269 = vmatprep.subr.mxu0 0.0
    %1270 = vmatpush1.msra.mxu0 0.0
    %1271 = vmatprep.subr.mxu0 0.0
    %1272 = vmatpush1.msra.mxu0 0.0
    %1273 = vmatprep.subr.mxu0 0.0
    %1274 = vmatpush1.msra.mxu0 0.0
    %1275 = vmatprep.subr.mxu0 0.0
    %1276 = vmatpush1.msra.mxu0 0.0
    %1277 = vmatprep.subr.mxu0 0.0
    %1278 = vmatpush1.msra.mxu0 0.0
    %1279 = vmatprep.subr.mxu0 0.0
    %1280 = vmatpush1.msra.mxu0 0.0
    %1281 = vmatprep.subr.mxu0 0.0
    %1282 = vmatpush1.msra.mxu0 0.0
    %1283 = vmatprep.subr.mxu0 0.0
    %1284 = vmatpush1.msra.mxu0 0.0
    %1285 = vmatprep.subr.mxu0 0.0
    %1286 = vmatpush1.msra.mxu0 0.0
    %1287 = vmatprep.subr.mxu0 0.0
    %1288 = vmatpush1.msra.mxu0 0.0
    %1289 = vmatprep.subr.mxu0 0.0
    %1290 = vmatpush1.msra.mxu0 0.0
    %1291 = vmatprep.mubr.f32.mxu0 0.0
    %v1292 = vand.u32 %v998, 4294901760
    %v1293 = vsub.f32 %v998, %v1292
    %v1294 = vand.u32 %v1293, 4294901760
    %1295 = vmatmul.mubr.f32.gmra.mrb[0].mxu0 %v1294
    %v1296 = vpop.f32.mrb[0].mxu0
    %v1297 = vadd.f32 %v1223, %v1296
    %v1298 = vpop.f32.mrb[0].mxu0
    %1299 = vdwg.mxu0
    %1300 = vmatprep.subr.mxu0 0.0
    %v1301 = vand.u32 %v994, 4294901760
    %v1302 = vsub.f32 %v994, %v1301
    %v1303 = vand.u32 %v1302, 4294901760
    %1304 = vmatpush1.msra.mxu0 %v1303
    %1305 = vmatprep.subr.mxu0 0.0
    %1306 = vmatpush1.msra.mxu0 0.0
    %1307 = vmatprep.subr.mxu0 0.0
    %1308 = vmatpush1.msra.mxu0 0.0
    %1309 = vmatprep.subr.mxu0 0.0
    %1310 = vmatpush1.msra.mxu0 0.0
    %1311 = vmatprep.subr.mxu0 0.0
    %1312 = vmatpush1.msra.mxu0 0.0
    %1313 = vmatprep.subr.mxu0 0.0
    %1314 = vmatpush1.msra.mxu0 0.0
    %1315 = vmatprep.subr.mxu0 0.0
    %1316 = vmatpush1.msra.mxu0 0.0
    %1317 = vmatprep.subr.mxu0 0.0
    %1318 = vmatpush1.msra.mxu0 0.0
    %1319 = vmatprep.subr.mxu0 0.0
    %1320 = vmatpush1.msra.mxu0 0.0
    %1321 = vmatprep.subr.mxu0 0.0
    %1322 = vmatpush1.msra.mxu0 0.0
    %1323 = vmatprep.subr.mxu0 0.0
    %1324 = vmatpush1.msra.mxu0 0.0
    %1325 = vmatprep.subr.mxu0 0.0
    %1326 = vmatpush1.msra.mxu0 0.0
    %1327 = vmatprep.subr.mxu0 0.0
    %1328 = vmatpush1.msra.mxu0 0.0
    %1329 = vmatprep.subr.mxu0 0.0
    %1330 = vmatpush1.msra.mxu0 0.0
    %1331 = vmatprep.subr.mxu0 0.0
    %1332 = vmatpush1.msra.mxu0 0.0
    %1333 = vmatprep.subr.mxu0 0.0
    %1334 = vmatpush1.msra.mxu0 0.0
    %1335 = vmatprep.subr.mxu0 0.0
    %1336 = vmatpush1.msra.mxu0 0.0
    %1337 = vmatprep.subr.mxu0 0.0
    %1338 = vmatpush1.msra.mxu0 0.0
    %1339 = vmatprep.subr.mxu0 0.0
    %1340 = vmatpush1.msra.mxu0 0.0
    %1341 = vmatprep.subr.mxu0 0.0
    %1342 = vmatpush1.msra.mxu0 0.0
    %1343 = vmatprep.subr.mxu0 0.0
    %1344 = vmatpush1.msra.mxu0 0.0
    %1345 = vmatprep.subr.mxu0 0.0
    %1346 = vmatpush1.msra.mxu0 0.0
    %1347 = vmatprep.subr.mxu0 0.0
    %1348 = vmatpush1.msra.mxu0 0.0
    %1349 = vmatprep.subr.mxu0 0.0
    %1350 = vmatpush1.msra.mxu0 0.0
    %1351 = vmatprep.subr.mxu0 0.0
    %1352 = vmatpush1.msra.mxu0 0.0
    %1353 = vmatprep.subr.mxu0 0.0
    %1354 = vmatpush1.msra.mxu0 0.0
    %1355 = vmatprep.subr.mxu0 0.0
    %1356 = vmatpush1.msra.mxu0 0.0
    %1357 = vmatprep.subr.mxu0 0.0
    %1358 = vmatpush1.msra.mxu0 0.0
    %1359 = vmatprep.subr.mxu0 0.0
    %1360 = vmatpush1.msra.mxu0 0.0
    %1361 = vmatprep.subr.mxu0 0.0
    %1362 = vmatpush1.msra.mxu0 0.0
    %1363 = vmatprep.subr.mxu0 0.0
    %1364 = vmatpush1.msra.mxu0 0.0
    %1365 = vmatprep.subr.mxu0 0.0
    %1366 = vmatpush1.msra.mxu0 0.0
    %1367 = vmatprep.mubr.f32.mxu0 0.0
    %v1368 = vand.u32 %v998, 4294901760
    %1369 = vmatmul.mubr.f32.gmra.mrb[0].mxu0 %v1368
    %v1370 = vpop.f32.mrb[0].mxu0
    %v1371 = vadd.f32 %v1297, %v1370
    %v1372 = vpop.f32.mrb[0].mxu0
    %1373 = vdwg.mxu0
    %1374 = vmatprep.subr.mxu0 0.0
    %v1375 = vand.u32 %v994, 4294901760
    %1376 = vmatpush1.msra.mxu0 %v1375
    %1377 = vmatprep.subr.mxu0 0.0
    %1378 = vmatpush1.msra.mxu0 0.0
    %1379 = vmatprep.subr.mxu0 0.0
    %1380 = vmatpush1.msra.mxu0 0.0
    %1381 = vmatprep.subr.mxu0 0.0
    %1382 = vmatpush1.msra.mxu0 0.0
    %1383 = vmatprep.subr.mxu0 0.0
    %1384 = vmatpush1.msra.mxu0 0.0
    %1385 = vmatprep.subr.mxu0 0.0
    %1386 = vmatpush1.msra.mxu0 0.0
    %1387 = vmatprep.subr.mxu0 0.0
    %1388 = vmatpush1.msra.mxu0 0.0
    %1389 = vmatprep.subr.mxu0 0.0
    %1390 = vmatpush1.msra.mxu0 0.0
    %1391 = vmatprep.subr.mxu0 0.0
    %1392 = vmatpush1.msra.mxu0 0.0
    %1393 = vmatprep.subr.mxu0 0.0
    %1394 = vmatpush1.msra.mxu0 0.0
    %1395 = vmatprep.subr.mxu0 0.0
    %1396 = vmatpush1.msra.mxu0 0.0
    %1397 = vmatprep.subr.mxu0 0.0
    %1398 = vmatpush1.msra.mxu0 0.0
    %1399 = vmatprep.subr.mxu0 0.0
    %1400 = vmatpush1.msra.mxu0 0.0
    %1401 = vmatprep.subr.mxu0 0.0
    %1402 = vmatpush1.msra.mxu0 0.0
    %1403 = vmatprep.subr.mxu0 0.0
    %1404 = vmatpush1.msra.mxu0 0.0
    %1405 = vmatprep.subr.mxu0 0.0
    %1406 = vmatpush1.msra.mxu0 0.0
    %1407 = vmatprep.subr.mxu0 0.0
    %1408 = vmatpush1.msra.mxu0 0.0
    %1409 = vmatprep.subr.mxu0 0.0
    %1410 = vmatpush1.msra.mxu0 0.0
    %1411 = vmatprep.subr.mxu0 0.0
    %1412 = vmatpush1.msra.mxu0 0.0
    %1413 = vmatprep.subr.mxu0 0.0
    %1414 = vmatpush1.msra.mxu0 0.0
    %1415 = vmatprep.subr.mxu0 0.0
    %1416 = vmatpush1.msra.mxu0 0.0
    %1417 = vmatprep.subr.mxu0 0.0
    %1418 = vmatpush1.msra.mxu0 0.0
    %1419 = vmatprep.subr.mxu0 0.0
    %1420 = vmatpush1.msra.mxu0 0.0
    %1421 = vmatprep.subr.mxu0 0.0
    %1422 = vmatpush1.msra.mxu0 0.0
    %1423 = vmatprep.subr.mxu0 0.0
    %1424 = vmatpush1.msra.mxu0 0.0
    %1425 = vmatprep.subr.mxu0 0.0
    %1426 = vmatpush1.msra.mxu0 0.0
    %1427 = vmatprep.subr.mxu0 0.0
    %1428 = vmatpush1.msra.mxu0 0.0
    %1429 = vmatprep.subr.mxu0 0.0
    %1430 = vmatpush1.msra.mxu0 0.0
    %1431 = vmatprep.subr.mxu0 0.0
    %1432 = vmatpush1.msra.mxu0 0.0
    %1433 = vmatprep.subr.mxu0 0.0
    %1434 = vmatpush1.msra.mxu0 0.0
    %1435 = vmatprep.subr.mxu0 0.0
    %1436 = vmatpush1.msra.mxu0 0.0
    %1437 = vmatprep.subr.mxu0 0.0
    %1438 = vmatpush1.msra.mxu0 0.0
    %1439 = vmatprep.mubr.f32.mxu0 0.0
    %v1440 = vand.u32 %v998, 4294901760
    %1441 = vmatmul.mubr.f32.gmra.mrb[0].mxu0 %v1440
    %v1442 = vpop.f32.mrb[0].mxu0
    %v1443 = vadd.f32 %v1371, %v1442
    %v1444 = vpop.f32.mrb[0].mxu0
    %1445 = vdwg.mxu0
    %v1447 = vsel %vm87, %v995, 0
    %1449 = vmatprep.subr.mxu0 0.0
    %v1450 = vand.u32 %v991, 4294901760
    %1451 = vmatpush1.msra.mxu0 %v1450
    %1452 = vmatprep.subr.mxu0 0.0
    %1453 = vmatpush1.msra.mxu0 0.0
    %1454 = vmatprep.subr.mxu0 0.0
    %1455 = vmatpush1.msra.mxu0 0.0
    %1456 = vmatprep.subr.mxu0 0.0
    %1457 = vmatpush1.msra.mxu0 0.0
    %1458 = vmatprep.subr.mxu0 0.0
    %1459 = vmatpush1.msra.mxu0 0.0
    %1460 = vmatprep.subr.mxu0 0.0
    %1461 = vmatpush1.msra.mxu0 0.0
    %1462 = vmatprep.subr.mxu0 0.0
    %1463 = vmatpush1.msra.mxu0 0.0
    %1464 = vmatprep.subr.mxu0 0.0
    %1465 = vmatpush1.msra.mxu0 0.0
    %1466 = vmatprep.subr.mxu0 0.0
    %1467 = vmatpush1.msra.mxu0 0.0
    %1468 = vmatprep.subr.mxu0 0.0
    %1469 = vmatpush1.msra.mxu0 0.0
    %1470 = vmatprep.subr.mxu0 0.0
    %1471 = vmatpush1.msra.mxu0 0.0
    %1472 = vmatprep.subr.mxu0 0.0
    %1473 = vmatpush1.msra.mxu0 0.0
    %1474 = vmatprep.subr.mxu0 0.0
    %1475 = vmatpush1.msra.mxu0 0.0
    %1476 = vmatprep.subr.mxu0 0.0
    %1477 = vmatpush1.msra.mxu0 0.0
    %1478 = vmatprep.subr.mxu0 0.0
    %1479 = vmatpush1.msra.mxu0 0.0
    %1480 = vmatprep.subr.mxu0 0.0
    %1481 = vmatpush1.msra.mxu0 0.0
    %1482 = vmatprep.subr.mxu0 0.0
    %1483 = vmatpush1.msra.mxu0 0.0
    %1484 = vmatprep.subr.mxu0 0.0
    %1485 = vmatpush1.msra.mxu0 0.0
    %1486 = vmatprep.subr.mxu0 0.0
    %1487 = vmatpush1.msra.mxu0 0.0
    %1488 = vmatprep.subr.mxu0 0.0
    %1489 = vmatpush1.msra.mxu0 0.0
    %1490 = vmatprep.subr.mxu0 0.0
    %1491 = vmatpush1.msra.mxu0 0.0
    %1492 = vmatprep.subr.mxu0 0.0
    %1493 = vmatpush1.msra.mxu0 0.0
    %1494 = vmatprep.subr.mxu0 0.0
    %1495 = vmatpush1.msra.mxu0 0.0
    %1496 = vmatprep.subr.mxu0 0.0
    %1497 = vmatpush1.msra.mxu0 0.0
    %1498 = vmatprep.subr.mxu0 0.0
    %1499 = vmatpush1.msra.mxu0 0.0
    %1500 = vmatprep.subr.mxu0 0.0
    %1501 = vmatpush1.msra.mxu0 0.0
    %1502 = vmatprep.subr.mxu0 0.0
    %1503 = vmatpush1.msra.mxu0 0.0
    %1504 = vmatprep.subr.mxu0 0.0
    %1505 = vmatpush1.msra.mxu0 0.0
    %1506 = vmatprep.subr.mxu0 0.0
    %1507 = vmatpush1.msra.mxu0 0.0
    %1508 = vmatprep.subr.mxu0 0.0
    %1509 = vmatpush1.msra.mxu0 0.0
    %1510 = vmatprep.subr.mxu0 0.0
    %1511 = vmatpush1.msra.mxu0 0.0
    %1512 = vmatprep.subr.mxu0 0.0
    %1513 = vmatpush1.msra.mxu0 0.0
    %1514 = vmatprep.mubr.f32.mxu0 0.0
    %v1515 = vand.u32 %v1447, 4294901760
    %v1516 = vsub.f32 %v1447, %v1515
    %v1517 = vand.u32 %v1516, 4294901760
    %v1518 = vsub.f32 %v1516, %v1517
    %v1519 = vand.u32 %v1518, 4294901760
    %1520 = vmatmul.mubr.f32.gmra.mrb[0].mxu0 %v1519
    %v1521 = vpop.f32.mrb[0].mxu0
    %v1522 = vadd.f32 %v1443, %v1521
    %v1523 = vpop.f32.mrb[0].mxu0
    %1524 = vdwg.mxu0
    %1525 = vmatprep.subr.mxu0 0.0
    %v1526 = vand.u32 %v991, 4294901760
    %v1527 = vsub.f32 %v991, %v1526
    %v1528 = vand.u32 %v1527, 4294901760
    %v1529 = vsub.f32 %v1527, %v1528
    %v1530 = vand.u32 %v1529, 4294901760
    %1531 = vmatpush1.msra.mxu0 %v1530
    %1532 = vmatprep.subr.mxu0 0.0
    %1533 = vmatpush1.msra.mxu0 0.0
    %1534 = vmatprep.subr.mxu0 0.0
    %1535 = vmatpush1.msra.mxu0 0.0
    %1536 = vmatprep.subr.mxu0 0.0
    %1537 = vmatpush1.msra.mxu0 0.0
    %1538 = vmatprep.subr.mxu0 0.0
    %1539 = vmatpush1.msra.mxu0 0.0
    %1540 = vmatprep.subr.mxu0 0.0
    %1541 = vmatpush1.msra.mxu0 0.0
    %1542 = vmatprep.subr.mxu0 0.0
    %1543 = vmatpush1.msra.mxu0 0.0
    %1544 = vmatprep.subr.mxu0 0.0
    %1545 = vmatpush1.msra.mxu0 0.0
    %1546 = vmatprep.subr.mxu0 0.0
    %1547 = vmatpush1.msra.mxu0 0.0
    %1548 = vmatprep.subr.mxu0 0.0
    %1549 = vmatpush1.msra.mxu0 0.0
    %1550 = vmatprep.subr.mxu0 0.0
    %1551 = vmatpush1.msra.mxu0 0.0
    %1552 = vmatprep.subr.mxu0 0.0
    %1553 = vmatpush1.msra.mxu0 0.0
    %1554 = vmatprep.subr.mxu0 0.0
    %1555 = vmatpush1.msra.mxu0 0.0
    %1556 = vmatprep.subr.mxu0 0.0
    %1557 = vmatpush1.msra.mxu0 0.0
    %1558 = vmatprep.subr.mxu0 0.0
    %1559 = vmatpush1.msra.mxu0 0.0
    %1560 = vmatprep.subr.mxu0 0.0
    %1561 = vmatpush1.msra.mxu0 0.0
    %1562 = vmatprep.subr.mxu0 0.0
    %1563 = vmatpush1.msra.mxu0 0.0
    %1564 = vmatprep.subr.mxu0 0.0
    %1565 = vmatpush1.msra.mxu0 0.0
    %1566 = vmatprep.subr.mxu0 0.0
    %1567 = vmatpush1.msra.mxu0 0.0
    %1568 = vmatprep.subr.mxu0 0.0
    %1569 = vmatpush1.msra.mxu0 0.0
    %1570 = vmatprep.subr.mxu0 0.0
    %1571 = vmatpush1.msra.mxu0 0.0
    %1572 = vmatprep.subr.mxu0 0.0
    %1573 = vmatpush1.msra.mxu0 0.0
    %1574 = vmatprep.subr.mxu0 0.0
    %1575 = vmatpush1.msra.mxu0 0.0
    %1576 = vmatprep.subr.mxu0 0.0
    %1577 = vmatpush1.msra.mxu0 0.0
    %1578 = vmatprep.subr.mxu0 0.0
    %1579 = vmatpush1.msra.mxu0 0.0
    %1580 = vmatprep.subr.mxu0 0.0
    %1581 = vmatpush1.msra.mxu0 0.0
    %1582 = vmatprep.subr.mxu0 0.0
    %1583 = vmatpush1.msra.mxu0 0.0
    %1584 = vmatprep.subr.mxu0 0.0
    %1585 = vmatpush1.msra.mxu0 0.0
    %1586 = vmatprep.subr.mxu0 0.0
    %1587 = vmatpush1.msra.mxu0 0.0
    %1588 = vmatprep.subr.mxu0 0.0
    %1589 = vmatpush1.msra.mxu0 0.0
    %1590 = vmatprep.subr.mxu0 0.0
    %1591 = vmatpush1.msra.mxu0 0.0
    %1592 = vmatprep.subr.mxu0 0.0
    %1593 = vmatpush1.msra.mxu0 0.0
    %1594 = vmatprep.mubr.f32.mxu0 0.0
    %v1595 = vand.u32 %v1447, 4294901760
    %1596 = vmatmul.mubr.f32.gmra.mrb[0].mxu0 %v1595
    %v1597 = vpop.f32.mrb[0].mxu0
    %v1598 = vadd.f32 %v1522, %v1597
    %v1599 = vpop.f32.mrb[0].mxu0
    %1600 = vdwg.mxu0
    %1601 = vmatprep.subr.mxu0 0.0
    %v1602 = vand.u32 %v991, 4294901760
    %v1603 = vsub.f32 %v991, %v1602
    %1604 = vmatpush1.msra.mxu0 %v1603
    %1605 = vmatprep.subr.mxu0 0.0
    %1606 = vmatpush1.msra.mxu0 0.0
    %1607 = vmatprep.subr.mxu0 0.0
    %1608 = vmatpush1.msra.mxu0 0.0
    %1609 = vmatprep.subr.mxu0 0.0
    %1610 = vmatpush1.msra.mxu0 0.0
    %1611 = vmatprep.subr.mxu0 0.0
    %1612 = vmatpush1.msra.mxu0 0.0
    %1613 = vmatprep.subr.mxu0 0.0
    %1614 = vmatpush1.msra.mxu0 0.0
    %1615 = vmatprep.subr.mxu0 0.0
    %1616 = vmatpush1.msra.mxu0 0.0
    %1617 = vmatprep.subr.mxu0 0.0
    %1618 = vmatpush1.msra.mxu0 0.0
    %1619 = vmatprep.subr.mxu0 0.0
    %1620 = vmatpush1.msra.mxu0 0.0
    %1621 = vmatprep.subr.mxu0 0.0
    %1622 = vmatpush1.msra.mxu0 0.0
    %1623 = vmatprep.subr.mxu0 0.0
    %1624 = vmatpush1.msra.mxu0 0.0
    %1625 = vmatprep.subr.mxu0 0.0
    %1626 = vmatpush1.msra.mxu0 0.0
    %1627 = vmatprep.subr.mxu0 0.0
    %1628 = vmatpush1.msra.mxu0 0.0
    %1629 = vmatprep.subr.mxu0 0.0
    %1630 = vmatpush1.msra.mxu0 0.0
    %1631 = vmatprep.subr.mxu0 0.0
    %1632 = vmatpush1.msra.mxu0 0.0
    %1633 = vmatprep.subr.mxu0 0.0
    %1634 = vmatpush1.msra.mxu0 0.0
    %1635 = vmatprep.subr.mxu0 0.0
    %1636 = vmatpush1.msra.mxu0 0.0
    %1637 = vmatprep.subr.mxu0 0.0
    %1638 = vmatpush1.msra.mxu0 0.0
    %1639 = vmatprep.subr.mxu0 0.0
    %1640 = vmatpush1.msra.mxu0 0.0
    %1641 = vmatprep.subr.mxu0 0.0
    %1642 = vmatpush1.msra.mxu0 0.0
    %1643 = vmatprep.subr.mxu0 0.0
    %1644 = vmatpush1.msra.mxu0 0.0
    %1645 = vmatprep.subr.mxu0 0.0
    %1646 = vmatpush1.msra.mxu0 0.0
    %1647 = vmatprep.subr.mxu0 0.0
    %1648 = vmatpush1.msra.mxu0 0.0
    %1649 = vmatprep.subr.mxu0 0.0
    %1650 = vmatpush1.msra.mxu0 0.0
    %1651 = vmatprep.subr.mxu0 0.0
    %1652 = vmatpush1.msra.mxu0 0.0
    %1653 = vmatprep.subr.mxu0 0.0
    %1654 = vmatpush1.msra.mxu0 0.0
    %1655 = vmatprep.subr.mxu0 0.0
    %1656 = vmatpush1.msra.mxu0 0.0
    %1657 = vmatprep.subr.mxu0 0.0
    %1658 = vmatpush1.msra.mxu0 0.0
    %1659 = vmatprep.subr.mxu0 0.0
    %1660 = vmatpush1.msra.mxu0 0.0
    %1661 = vmatprep.subr.mxu0 0.0
    %1662 = vmatpush1.msra.mxu0 0.0
    %1663 = vmatprep.subr.mxu0 0.0
    %1664 = vmatpush1.msra.mxu0 0.0
    %1665 = vmatprep.subr.mxu0 0.0
    %1666 = vmatpush1.msra.mxu0 0.0
    %1667 = vmatprep.mubr.f32.mxu0 0.0
    %v1668 = vand.u32 %v1447, 4294901760
    %v1669 = vsub.f32 %v1447, %v1668
    %1670 = vmatmul.mubr.f32.gmra.mrb[0].mxu0 %v1669
    %v1671 = vpop.f32.mrb[0].mxu0
    %v1672 = vadd.f32 %v1598, %v1671
    %v1673 = vpop.f32.mrb[0].mxu0
    %1674 = vdwg.mxu0
    %1675 = vmatprep.subr.mxu0 0.0
    %v1676 = vand.u32 %v991, 4294901760
    %1677 = vmatpush1.msra.mxu0 %v1676
    %1678 = vmatprep.subr.mxu0 0.0
    %1679 = vmatpush1.msra.mxu0 0.0
    %1680 = vmatprep.subr.mxu0 0.0
    %1681 = vmatpush1.msra.mxu0 0.0
    %1682 = vmatprep.subr.mxu0 0.0
    %1683 = vmatpush1.msra.mxu0 0.0
    %1684 = vmatprep.subr.mxu0 0.0
    %1685 = vmatpush1.msra.mxu0 0.0
    %1686 = vmatprep.subr.mxu0 0.0
    %1687 = vmatpush1.msra.mxu0 0.0
    %1688 = vmatprep.subr.mxu0 0.0
    %1689 = vmatpush1.msra.mxu0 0.0
    %1690 = vmatprep.subr.mxu0 0.0
    %1691 = vmatpush1.msra.mxu0 0.0
    %1692 = vmatprep.subr.mxu0 0.0
    %1693 = vmatpush1.msra.mxu0 0.0
    %1694 = vmatprep.subr.mxu0 0.0
    %1695 = vmatpush1.msra.mxu0 0.0
    %1696 = vmatprep.subr.mxu0 0.0
    %1697 = vmatpush1.msra.mxu0 0.0
    %1698 = vmatprep.subr.mxu0 0.0
    %1699 = vmatpush1.msra.mxu0 0.0
    %1700 = vmatprep.subr.mxu0 0.0
    %1701 = vmatpush1.msra.mxu0 0.0
    %1702 = vmatprep.subr.mxu0 0.0
    %1703 = vmatpush1.msra.mxu0 0.0
    %1704 = vmatprep.subr.mxu0 0.0
    %1705 = vmatpush1.msra.mxu0 0.0
    %1706 = vmatprep.subr.mxu0 0.0
    %1707 = vmatpush1.msra.mxu0 0.0
    %1708 = vmatprep.subr.mxu0 0.0
    %1709 = vmatpush1.msra.mxu0 0.0
    %1710 = vmatprep.subr.mxu0 0.0
    %1711 = vmatpush1.msra.mxu0 0.0
    %1712 = vmatprep.subr.mxu0 0.0
    %1713 = vmatpush1.msra.mxu0 0.0
    %1714 = vmatprep.subr.mxu0 0.0
    %1715 = vmatpush1.msra.mxu0 0.0
    %1716 = vmatprep.subr.mxu0 0.0
    %1717 = vmatpush1.msra.mxu0 0.0
    %1718 = vmatprep.subr.mxu0 0.0
    %1719 = vmatpush1.msra.mxu0 0.0
    %1720 = vmatprep.subr.mxu0 0.0
    %1721 = vmatpush1.msra.mxu0 0.0
    %1722 = vmatprep.subr.mxu0 0.0
    %1723 = vmatpush1.msra.mxu0 0.0
    %1724 = vmatprep.subr.mxu0 0.0
    %1725 = vmatpush1.msra.mxu0 0.0
    %1726 = vmatprep.subr.mxu0 0.0
    %1727 = vmatpush1.msra.mxu0 0.0
    %1728 = vmatprep.subr.mxu0 0.0
    %1729 = vmatpush1.msra.mxu0 0.0
    %1730 = vmatprep.subr.mxu0 0.0
    %1731 = vmatpush1.msra.mxu0 0.0
    %1732 = vmatprep.subr.mxu0 0.0
    %1733 = vmatpush1.msra.mxu0 0.0
    %1734 = vmatprep.subr.mxu0 0.0
    %1735 = vmatpush1.msra.mxu0 0.0
    %1736 = vmatprep.subr.mxu0 0.0
    %1737 = vmatpush1.msra.mxu0 0.0
    %1738 = vmatprep.subr.mxu0 0.0
    %1739 = vmatpush1.msra.mxu0 0.0
    %1740 = vmatprep.mubr.f32.mxu0 0.0
    %v1741 = vand.u32 %v1447, 4294901760
    %v1742 = vsub.f32 %v1447, %v1741
    %v1743 = vand.u32 %v1742, 4294901760
    %1744 = vmatmul.mubr.f32.gmra.mrb[0].mxu0 %v1743
    %v1745 = vpop.f32.mrb[0].mxu0
    %v1746 = vadd.f32 %v1672, %v1745
    %v1747 = vpop.f32.mrb[0].mxu0
    %1748 = vdwg.mxu0
    %1749 = vmatprep.subr.mxu0 0.0
    %v1750 = vand.u32 %v991, 4294901760
    %v1751 = vsub.f32 %v991, %v1750
    %v1752 = vand.u32 %v1751, 4294901760
    %1753 = vmatpush1.msra.mxu0 %v1752
    %1754 = vmatprep.subr.mxu0 0.0
    %1755 = vmatpush1.msra.mxu0 0.0
    %1756 = vmatprep.subr.mxu0 0.0
    %1757 = vmatpush1.msra.mxu0 0.0
    %1758 = vmatprep.subr.mxu0 0.0
    %1759 = vmatpush1.msra.mxu0 0.0
    %1760 = vmatprep.subr.mxu0 0.0
    %1761 = vmatpush1.msra.mxu0 0.0
    %1762 = vmatprep.subr.mxu0 0.0
    %1763 = vmatpush1.msra.mxu0 0.0
    %1764 = vmatprep.subr.mxu0 0.0
    %1765 = vmatpush1.msra.mxu0 0.0
    %1766 = vmatprep.subr.mxu0 0.0
    %1767 = vmatpush1.msra.mxu0 0.0
    %1768 = vmatprep.subr.mxu0 0.0
    %1769 = vmatpush1.msra.mxu0 0.0
    %1770 = vmatprep.subr.mxu0 0.0
    %1771 = vmatpush1.msra.mxu0 0.0
    %1772 = vmatprep.subr.mxu0 0.0
    %1773 = vmatpush1.msra.mxu0 0.0
    %1774 = vmatprep.subr.mxu0 0.0
    %1775 = vmatpush1.msra.mxu0 0.0
    %1776 = vmatprep.subr.mxu0 0.0
    %1777 = vmatpush1.msra.mxu0 0.0
    %1778 = vmatprep.subr.mxu0 0.0
    %1779 = vmatpush1.msra.mxu0 0.0
    %1780 = vmatprep.subr.mxu0 0.0
    %1781 = vmatpush1.msra.mxu0 0.0
    %1782 = vmatprep.subr.mxu0 0.0
    %1783 = vmatpush1.msra.mxu0 0.0
    %1784 = vmatprep.subr.mxu0 0.0
    %1785 = vmatpush1.msra.mxu0 0.0
    %1786 = vmatprep.subr.mxu0 0.0
    %1787 = vmatpush1.msra.mxu0 0.0
    %1788 = vmatprep.subr.mxu0 0.0
    %1789 = vmatpush1.msra.mxu0 0.0
    %1790 = vmatprep.subr.mxu0 0.0
    %1791 = vmatpush1.msra.mxu0 0.0
    %1792 = vmatprep.subr.mxu0 0.0
    %1793 = vmatpush1.msra.mxu0 0.0
    %1794 = vmatprep.subr.mxu0 0.0
    %1795 = vmatpush1.msra.mxu0 0.0
    %1796 = vmatprep.subr.mxu0 0.0
    %1797 = vmatpush1.msra.mxu0 0.0
    %1798 = vmatprep.subr.mxu0 0.0
    %1799 = vmatpush1.msra.mxu0 0.0
    %1800 = vmatprep.subr.mxu0 0.0
    %1801 = vmatpush1.msra.mxu0 0.0
    %1802 = vmatprep.subr.mxu0 0.0
    %1803 = vmatpush1.msra.mxu0 0.0
    %1804 = vmatprep.subr.mxu0 0.0
    %1805 = vmatpush1.msra.mxu0 0.0
    %1806 = vmatprep.subr.mxu0 0.0
    %1807 = vmatpush1.msra.mxu0 0.0
    %1808 = vmatprep.subr.mxu0 0.0
    %1809 = vmatpush1.msra.mxu0 0.0
    %1810 = vmatprep.subr.mxu0 0.0
    %1811 = vmatpush1.msra.mxu0 0.0
    %1812 = vmatprep.subr.mxu0 0.0
    %1813 = vmatpush1.msra.mxu0 0.0
    %1814 = vmatprep.subr.mxu0 0.0
    %1815 = vmatpush1.msra.mxu0 0.0
    %1816 = vmatprep.mubr.f32.mxu0 0.0
    %v1817 = vand.u32 %v1447, 4294901760
    %1818 = vmatmul.mubr.f32.gmra.mrb[0].mxu0 %v1817
    %v1819 = vpop.f32.mrb[0].mxu0
    %v1820 = vadd.f32 %v1746, %v1819
    %v1821 = vpop.f32.mrb[0].mxu0
    %1822 = vdwg.mxu0
    %1823 = vmatprep.subr.mxu0 0.0
    %v1824 = vand.u32 %v991, 4294901760
    %1825 = vmatpush1.msra.mxu0 %v1824
    %1826 = vmatprep.subr.mxu0 0.0
    %1827 = vmatpush1.msra.mxu0 0.0
    %1828 = vmatprep.subr.mxu0 0.0
    %1829 = vmatpush1.msra.mxu0 0.0
    %1830 = vmatprep.subr.mxu0 0.0
    %1831 = vmatpush1.msra.mxu0 0.0
    %1832 = vmatprep.subr.mxu0 0.0
    %1833 = vmatpush1.msra.mxu0 0.0
    %1834 = vmatprep.subr.mxu0 0.0
    %1835 = vmatpush1.msra.mxu0 0.0
    %1836 = vmatprep.subr.mxu0 0.0
    %1837 = vmatpush1.msra.mxu0 0.0
    %1838 = vmatprep.subr.mxu0 0.0
    %1839 = vmatpush1.msra.mxu0 0.0
    %1840 = vmatprep.subr.mxu0 0.0
    %1841 = vmatpush1.msra.mxu0 0.0
    %1842 = vmatprep.subr.mxu0 0.0
    %1843 = vmatpush1.msra.mxu0 0.0
    %1844 = vmatprep.subr.mxu0 0.0
    %1845 = vmatpush1.msra.mxu0 0.0
    %1846 = vmatprep.subr.mxu0 0.0
    %1847 = vmatpush1.msra.mxu0 0.0
    %1848 = vmatprep.subr.mxu0 0.0
    %1849 = vmatpush1.msra.mxu0 0.0
    %1850 = vmatprep.subr.mxu0 0.0
    %1851 = vmatpush1.msra.mxu0 0.0
    %1852 = vmatprep.subr.mxu0 0.0
    %1853 = vmatpush1.msra.mxu0 0.0
    %1854 = vmatprep.subr.mxu0 0.0
    %1855 = vmatpush1.msra.mxu0 0.0
    %1856 = vmatprep.subr.mxu0 0.0
    %1857 = vmatpush1.msra.mxu0 0.0
    %1858 = vmatprep.subr.mxu0 0.0
    %1859 = vmatpush1.msra.mxu0 0.0
    %1860 = vmatprep.subr.mxu0 0.0
    %1861 = vmatpush1.msra.mxu0 0.0
    %1862 = vmatprep.subr.mxu0 0.0
    %1863 = vmatpush1.msra.mxu0 0.0
    %1864 = vmatprep.subr.mxu0 0.0
    %1865 = vmatpush1.msra.mxu0 0.0
    %1866 = vmatprep.subr.mxu0 0.0
    %1867 = vmatpush1.msra.mxu0 0.0
    %1868 = vmatprep.subr.mxu0 0.0
    %1869 = vmatpush1.msra.mxu0 0.0
    %1870 = vmatprep.subr.mxu0 0.0
    %1871 = vmatpush1.msra.mxu0 0.0
    %1872 = vmatprep.subr.mxu0 0.0
    %1873 = vmatpush1.msra.mxu0 0.0
    %1874 = vmatprep.subr.mxu0 0.0
    %1875 = vmatpush1.msra.mxu0 0.0
    %1876 = vmatprep.subr.mxu0 0.0
    %1877 = vmatpush1.msra.mxu0 0.0
    %1878 = vmatprep.subr.mxu0 0.0
    %1879 = vmatpush1.msra.mxu0 0.0
    %1880 = vmatprep.subr.mxu0 0.0
    %1881 = vmatpush1.msra.mxu0 0.0
    %1882 = vmatprep.subr.mxu0 0.0
    %1883 = vmatpush1.msra.mxu0 0.0
    %1884 = vmatprep.subr.mxu0 0.0
    %1885 = vmatpush1.msra.mxu0 0.0
    %1886 = vmatprep.subr.mxu0 0.0
    %1887 = vmatpush1.msra.mxu0 0.0
    %1888 = vmatprep.mubr.f32.mxu0 0.0
    %v1889 = vand.u32 %v1447, 4294901760
    %1890 = vmatmul.mubr.f32.gmra.mrb[0].mxu0 %v1889
    %v1891 = vpop.f32.mrb[0].mxu0
    %v1892 = vadd.f32 %v1820, %v1891
    %v1893 = vpop.f32.mrb[0].mxu0
    %1894 = vdwg.mxu0
    %vm1895 = vcmask 523264
    %1896 = vst.msk [vmem:[#allocation11] sm:$0xff] %vm1895, %v1892
    // Predicated region
    $region50: #{tpu_custom_call.1} parent=1 // pred_check
      _
    $region51: #{tpu_custom_call.1} parent=1 // pred_check_branch
      %1898 = sbr.rel (0) target = $region53
    $region52: #{tpu_custom_call.1} parent=1 // pred_region
      %s1900 = ssub.s32 128, 128
      %1901 = vsyncadd [#allocation4], %s1900
      %s1903 = sshll.u32 [#allocation11], 4
      %s1904 = int_to_ptr.vmem [resolvable:$true] %s1903
      %1906 = dma.vmem_to_hbm [thread:$0]  %s1904, 128, %s7, [#allocation4]
    $region53: #{tpu_custom_call.1} parent=1 // pred_fallthru
      _
    // Predicated region
    $region54: #{tpu_custom_call.1} parent=1 // pred_check
      _
    $region55: #{tpu_custom_call.1} parent=1 // pred_check_branch
      %1908 = sbr.rel (0) target = $region57
    $region56: #{tpu_custom_call.1} parent=1 // pred_region
      %1909 = dma.done [#allocation4], 128
    $region57: #{tpu_custom_call.1} parent=1 // pred_fallthru
      _
    %1910 = vsyncpa [#allocation3], 1
    %1911 = vsyncpa [#allocation6], 1
    %1912 = vsyncpa [#allocation9], 1
    %1913 = vsyncpa [#allocation4], 1

</llo_original>
